<compile_context>
chip_gen: v7x
topology: tpu7x:2x2x1
jax: 0.10.0
libtpu: 0.0.40
codegen_flags: <defaults>
</compile_context>

<pallas_src>
import functools

import numpy as np

import jax
import jax.numpy as jnp
from jax import lax
from jax.experimental import pallas as pl
from jax.experimental.pallas import tpu as pltpu


def _instance_norm_rows(y, inv_hw, eps):
    """InstanceNorm over the lane (pixel) axis, one row per channel. Single pass."""
    s1 = jnp.sum(y, axis=1, keepdims=True)
    s2 = jnp.sum(y * y, axis=1, keepdims=True)
    mean = s1 * inv_hw
    var = jnp.maximum(s2 * inv_hw - mean * mean, jnp.float32(0.0))
    return (y - mean) * lax.rsqrt(var + eps)


def _convfu_kernel(x_ref, masks_ref, wdw_ref, w1_ref, wl_ref, o_ref,
                   *, width, hw, cin, cout, eps, neg_slope):
    # x_ref:    (1, Cin, HW)       input sample, lane-dense
    # masks_ref:(9, 1, HW)         0/1 zero-padding masks per 3x3 tap
    # wdw_ref:  (9, Cin, 1)        depthwise 3x3 weights, tap-major
    # w1_ref:   (9, Cout, Cin)     3x3 conv weights, tap-major
    # wl_ref:   (Cout, Cin)        1x1 conv weights
    # o_ref:    (1, Cout, HW)
    eps = jnp.float32(eps)
    slope = jnp.float32(neg_slope)
    inv_hw = jnp.float32(1.0 / hw)

    x = x_ref[0]                                        # (Cin, HW) f32

    taps = tuple((dh, dw) for dh in (-1, 0, 1) for dw in (-1, 0, 1))
    # Hoist mask loads (each mask is reused by both 3x3 convs).
    mask_vals = [masks_ref[k] for k in range(9)]        # each (1, HW)

    def shift_tap(a, k):
        # a_shift[:, i] = a[:, i + dh*W + dw] with zero padding at image borders.
        dh, dw = taps[k]
        d = dh * width + dw
        if d == 0:
            return a
        rolled = pltpu.roll(a, shift=(-d) % hw, axis=1)  # XLU lane rotate
        return rolled * mask_vals[k]                     # kill wrapped pixels

    # ---- convH3: depthwise 3x3 (VPU broadcast-FMA per tap) -------------------
    y_h = jnp.zeros_like(x)                              # (Cin, HW)
    for k in range(9):
        y_h = y_h + wdw_ref[k] * shift_tap(x, k)         # (Cin,1) * (Cin,HW)

    # ---- InstH1 + LeakyReLU --------------------------------------------------
    a_h = _instance_norm_rows(y_h, inv_hw, eps)
    a_h = jnp.where(a_h >= 0, a_h, slope * a_h)

    # ---- convH1: 3x3, Cin -> Cout. Shift-then-contract per tap so the biggest
    #      live intermediate is only (Cout, HW). --------------------------------
    y2_h = jnp.zeros((cout, hw), jnp.float32)
    for k in range(9):
        xs = shift_tap(a_h, k)                           # (Cin, HW)
        w1k = w1_ref[k]                                  # (Cout, Cin)
        for ci in range(cin):
            y2_h = y2_h + w1k[:, ci:ci + 1] * xs[ci:ci + 1, :]   # (Cout,1)*(1,HW)

    # ---- convL1: 1x1, Cin -> Cout (VPU) --------------------------------------
    wl = wl_ref[...]                                     # (Cout, Cin)
    y2_l = jnp.zeros((cout, hw), jnp.float32)
    for ci in range(cin):
        y2_l = y2_l + wl[:, ci:ci + 1] * x[ci:ci + 1, :]

    # ---- InstH2 / InstL2, add, LeakyReLU -------------------------------------
    z = _instance_norm_rows(y2_h, inv_hw, eps) + _instance_norm_rows(y2_l, inv_hw, eps)
    z = jnp.where(z >= 0, z, slope * z)
    o_ref[0] = z.astype(o_ref.dtype)


def conv_fu_unit(x, w_dw, w_h1, w_l1, *, eps=1e-5, neg_slope=0.2):
    """x: (N, Cin, H, W); w_dw: (Cin, 1, 3, 3) depthwise; w_h1: (Cout, Cin, 3, 3);
    w_l1: (Cout, Cin, 1, 1). Conv biases are omitted on purpose: every conv is
    followed by InstanceNorm2d(affine=False), so biases cancel in (y - mean).
    Returns (N, Cout, H, W)."""
    N, Cin, H, W = x.shape
    Cout = w_h1.shape[0]
    HW = H * W

    # Reshape-only glue: keep HW as the last (lane) dimension.
    x_flat = x.reshape(N, Cin, HW).astype(jnp.float32)
    wdw = jnp.transpose(w_dw.reshape(Cin, 9), (1, 0)).reshape(9, Cin, 1).astype(jnp.float32)
    w1 = jnp.transpose(w_h1, (2, 3, 0, 1)).reshape(9, Cout, Cin).astype(jnp.float32)
    wl = w_l1.reshape(Cout, Cin).astype(jnp.float32)

    # Zero-padding masks per tap (destination-pixel validity), host-built constants.
    rr = np.arange(H, dtype=np.int64).reshape(H, 1)
    cc = np.arange(W, dtype=np.int64).reshape(1, W)
    mask_list = []
    for dh in (-1, 0, 1):
        for dw in (-1, 0, 1):
            m = ((rr + dh >= 0) & (rr + dh < H) & (cc + dw >= 0) & (cc + dw < W))
            mask_list.append(m.astype(np.float32).reshape(1, HW))
    masks = jnp.asarray(np.stack(mask_list, axis=0))      # (9, 1, HW)

    kernel = functools.partial(
        _convfu_kernel, width=W, hw=HW, cin=Cin, cout=Cout,
        eps=eps, neg_slope=neg_slope)

    out = pl.pallas_call(
        kernel,
        out_shape=jax.ShapeDtypeStruct((N, Cout, HW), jnp.float32),
        grid_spec=pltpu.PrefetchScalarGridSpec(
            num_scalar_prefetch=0,
            grid=(N,),
            in_specs=[
                pl.BlockSpec((1, Cin, HW), lambda n: (n, 0, 0)),
                pl.BlockSpec((9, 1, HW), lambda n: (0, 0, 0)),
                pl.BlockSpec((9, Cin, 1), lambda n: (0, 0, 0)),
                pl.BlockSpec((9, Cout, Cin), lambda n: (0, 0, 0)),
                pl.BlockSpec((Cout, Cin), lambda n: (0, 0)),
            ],
            out_specs=pl.BlockSpec((1, Cout, HW), lambda n: (n, 0, 0)),
        ),
        compiler_params=pltpu.CompilerParams(dimension_semantics=("parallel",)),
    )(x_flat, masks, wdw, w1, wl)

    return out.reshape(N, Cout, H, W)


# ----------------------------- pure-JAX reference -----------------------------
def _instance_norm_nchw(y, eps):
    m = jnp.mean(y, axis=(2, 3), keepdims=True)
    v = jnp.mean(jnp.square(y - m), axis=(2, 3), keepdims=True)
    return (y - m) / jnp.sqrt(v + eps)


def _reference(x, w_dw, b_dw, w_h1, b_h1, w_l1, b_l1, *, eps=1e-5, neg_slope=0.2):
    dn = ("NCHW", "OIHW", "NCHW")
    hp = lax.Precision.HIGHEST
    cin = x.shape[1]
    h = lax.conv_general_dilated(x, w_dw, (1, 1), ((1, 1), (1, 1)),
                                 dimension_numbers=dn, feature_group_count=cin,
                                 precision=hp)
    h = h + b_dw[None, :, None, None]
    h = _instance_norm_nchw(h, eps)
    h = jnp.where(h >= 0, h, neg_slope * h)
    h = lax.conv_general_dilated(h, w_h1, (1, 1), ((1, 1), (1, 1)),
                                 dimension_numbers=dn, precision=hp)
    h = h + b_h1[None, :, None, None]
    h = _instance_norm_nchw(h, eps)
    l = lax.conv_general_dilated(x, w_l1, (1, 1), ((0, 0), (0, 0)),
                                 dimension_numbers=dn, precision=hp)
    l = l + b_l1[None, :, None, None]
    l = _instance_norm_nchw(l, eps)
    y = h + l
    return jnp.where(y >= 0, y, neg_slope * y)


if __name__ == "__main__":
    key = jax.random.PRNGKey(0)
    kx, k1, k2, k3, k4, k5, k6 = jax.random.split(key, 7)

    N, in_chans, out_chans, H, W = 2, 4, 8, 16, 16

    x = jax.random.normal(kx, (N, in_chans, H, W), dtype=jnp.float32)

    # Deterministic parameter init (shapes match the nn.Conv2d layers).
    b3 = 1.0 / (1 * 3 * 3) ** 0.5      # depthwise: fan_in = 9
    w_dw = jax.random.uniform(k1, (in_chans, 1, 3, 3), minval=-b3, maxval=b3)
    b_dw = jax.random.uniform(k2, (in_chans,), minval=-b3, maxval=b3)
    bh = 1.0 / (in_chans * 3 * 3) ** 0.5
    w_h1 = jax.random.uniform(k3, (out_chans, in_chans, 3, 3), minval=-bh, maxval=bh)
    b_h1 = jax.random.uniform(k4, (out_chans,), minval=-bh, maxval=bh)
    bl = 1.0 / (in_chans * 1 * 1) ** 0.5
    w_l1 = jax.random.uniform(k5, (out_chans, in_chans, 1, 1), minval=-bl, maxval=bl)
    b_l1 = jax.random.uniform(k6, (out_chans,), minval=-bl, maxval=bl)

    out = conv_fu_unit(x, w_dw, w_h1, w_l1)
    out = jax.block_until_ready(out)
    assert out.shape == (N, out_chans, H, W), out.shape

    # Reference includes the conv biases: they cancel under InstanceNorm, which
    # is exactly why the kernel drops them.
    ref = _reference(x, w_dw, b_dw, w_h1, b_h1, w_l1, b_l1)
    err = float(jnp.max(jnp.abs(out - ref)))
    assert err < 1e-3, err

    print("KERNEL_OK")
</pallas_src>

<mosaic_0001>
module attributes {stable_mosaic.version = 11 : i64} {
  func.func @_convfu_kernel(%arg0: i32, %arg1: memref<1x4x256xf32, #tpu.memory_space<vmem>>, %arg2: memref<9x1x256xf32, #tpu.memory_space<vmem>>, %arg3: memref<9x4x1xf32, #tpu.memory_space<vmem>>, %arg4: memref<9x8x4xf32, #tpu.memory_space<vmem>>, %arg5: memref<8x4xf32, #tpu.memory_space<vmem>>, %arg6: memref<1x8x256xf32, #tpu.memory_space<vmem>>) attributes {dimension_semantics = [#tpu.dimension_semantics<parallel>], iteration_bounds = array<i64: 2>, scalar_prefetch = 0 : i64, scratch_operands = 0 : i64, tpu.core_type = #tpu.core_type<tc>, window_params = [{transform_indices = @transform_0, window_bounds = array<i64: 1, 4, 256>}, {pipeline_mode = #tpu.pipeline_mode<synchronous>, transform_indices = @transform_1, window_bounds = array<i64: 9, 1, 256>}, {pipeline_mode = #tpu.pipeline_mode<synchronous>, transform_indices = @transform_2, window_bounds = array<i64: 9, 4, 1>}, {pipeline_mode = #tpu.pipeline_mode<synchronous>, transform_indices = @transform_3, window_bounds = array<i64: 9, 8, 4>}, {pipeline_mode = #tpu.pipeline_mode<synchronous>, transform_indices = @transform_4, window_bounds = array<i64: 8, 4>}, {transform_indices = @transform_5, window_bounds = array<i64: 1, 8, 256>}]} {
    %c0 = arith.constant 0 : index
    %c0_0 = arith.constant 0 : index
    %c0_1 = arith.constant 0 : index
    %0 = vector.load %arg1[%c0, %c0_0, %c0_1] : memref<1x4x256xf32, #tpu.memory_space<vmem>>, vector<1x4x256xf32>
    %1 = vector.shape_cast %0 : vector<1x4x256xf32> to vector<4x256xf32>
    %c0_2 = arith.constant 0 : index
    %c0_3 = arith.constant 0 : index
    %c0_4 = arith.constant 0 : index
    %2 = vector.load %arg2[%c0_2, %c0_3, %c0_4] : memref<9x1x256xf32, #tpu.memory_space<vmem>>, vector<1x1x256xf32>
    %3 = vector.shape_cast %2 : vector<1x1x256xf32> to vector<1x256xf32>
    %c1 = arith.constant 1 : index
    %c0_5 = arith.constant 0 : index
    %c0_6 = arith.constant 0 : index
    %4 = vector.load %arg2[%c1, %c0_5, %c0_6] : memref<9x1x256xf32, #tpu.memory_space<vmem>>, vector<1x1x256xf32>
    %5 = vector.shape_cast %4 : vector<1x1x256xf32> to vector<1x256xf32>
    %c2 = arith.constant 2 : index
    %c0_7 = arith.constant 0 : index
    %c0_8 = arith.constant 0 : index
    %6 = vector.load %arg2[%c2, %c0_7, %c0_8] : memref<9x1x256xf32, #tpu.memory_space<vmem>>, vector<1x1x256xf32>
    %7 = vector.shape_cast %6 : vector<1x1x256xf32> to vector<1x256xf32>
    %c3 = arith.constant 3 : index
    %c0_9 = arith.constant 0 : index
    %c0_10 = arith.constant 0 : index
    %8 = vector.load %arg2[%c3, %c0_9, %c0_10] : memref<9x1x256xf32, #tpu.memory_space<vmem>>, vector<1x1x256xf32>
    %9 = vector.shape_cast %8 : vector<1x1x256xf32> to vector<1x256xf32>
    %c5 = arith.constant 5 : index
    %c0_11 = arith.constant 0 : index
    %c0_12 = arith.constant 0 : index
    %10 = vector.load %arg2[%c5, %c0_11, %c0_12] : memref<9x1x256xf32, #tpu.memory_space<vmem>>, vector<1x1x256xf32>
    %11 = vector.shape_cast %10 : vector<1x1x256xf32> to vector<1x256xf32>
    %c6 = arith.constant 6 : index
    %c0_13 = arith.constant 0 : index
    %c0_14 = arith.constant 0 : index
    %12 = vector.load %arg2[%c6, %c0_13, %c0_14] : memref<9x1x256xf32, #tpu.memory_space<vmem>>, vector<1x1x256xf32>
    %13 = vector.shape_cast %12 : vector<1x1x256xf32> to vector<1x256xf32>
    %c7 = arith.constant 7 : index
    %c0_15 = arith.constant 0 : index
    %c0_16 = arith.constant 0 : index
    %14 = vector.load %arg2[%c7, %c0_15, %c0_16] : memref<9x1x256xf32, #tpu.memory_space<vmem>>, vector<1x1x256xf32>
    %15 = vector.shape_cast %14 : vector<1x1x256xf32> to vector<1x256xf32>
    %c8 = arith.constant 8 : index
    %c0_17 = arith.constant 0 : index
    %c0_18 = arith.constant 0 : index
    %16 = vector.load %arg2[%c8, %c0_17, %c0_18] : memref<9x1x256xf32, #tpu.memory_space<vmem>>, vector<1x1x256xf32>
    %17 = vector.shape_cast %16 : vector<1x1x256xf32> to vector<1x256xf32>
    %cst = arith.constant 0.000000e+00 : f32
    %18 = vector.broadcast %cst : f32 to vector<4x256xf32>
    %c0_19 = arith.constant 0 : index
    %c0_20 = arith.constant 0 : index
    %c0_21 = arith.constant 0 : index
    %19 = vector.load %arg3[%c0_19, %c0_20, %c0_21] : memref<9x4x1xf32, #tpu.memory_space<vmem>>, vector<1x4x1xf32>
    %20 = vector.shape_cast %19 : vector<1x4x1xf32> to vector<4x1xf32>
    %c17_i32 = arith.constant 17 : i32
    %21 = tpu.dynamic_rotate %1 by %c17_i32 dim 1 : vector<4x256xf32>, i32 -> vector<4x256xf32>
    %22 = vector.broadcast %3 : vector<1x256xf32> to vector<4x256xf32>
    %23 = arith.mulf %21, %22 : vector<4x256xf32>
    %24 = vector.broadcast %20 : vector<4x1xf32> to vector<4x256xf32>
    %25 = arith.mulf %24, %23 : vector<4x256xf32>
    %26 = arith.addf %18, %25 : vector<4x256xf32>
    %c1_22 = arith.constant 1 : index
    %c0_23 = arith.constant 0 : index
    %c0_24 = arith.constant 0 : index
    %27 = vector.load %arg3[%c1_22, %c0_23, %c0_24] : memref<9x4x1xf32, #tpu.memory_space<vmem>>, vector<1x4x1xf32>
    %28 = vector.shape_cast %27 : vector<1x4x1xf32> to vector<4x1xf32>
    %c16_i32 = arith.constant 16 : i32
    %29 = tpu.dynamic_rotate %1 by %c16_i32 dim 1 : vector<4x256xf32>, i32 -> vector<4x256xf32>
    %30 = vector.broadcast %5 : vector<1x256xf32> to vector<4x256xf32>
    %31 = arith.mulf %29, %30 : vector<4x256xf32>
    %32 = vector.broadcast %28 : vector<4x1xf32> to vector<4x256xf32>
    %33 = arith.mulf %32, %31 : vector<4x256xf32>
    %34 = arith.addf %26, %33 : vector<4x256xf32>
    %c2_25 = arith.constant 2 : index
    %c0_26 = arith.constant 0 : index
    %c0_27 = arith.constant 0 : index
    %35 = vector.load %arg3[%c2_25, %c0_26, %c0_27] : memref<9x4x1xf32, #tpu.memory_space<vmem>>, vector<1x4x1xf32>
    %36 = vector.shape_cast %35 : vector<1x4x1xf32> to vector<4x1xf32>
    %c15_i32 = arith.constant 15 : i32
    %37 = tpu.dynamic_rotate %1 by %c15_i32 dim 1 : vector<4x256xf32>, i32 -> vector<4x256xf32>
    %38 = vector.broadcast %7 : vector<1x256xf32> to vector<4x256xf32>
    %39 = arith.mulf %37, %38 : vector<4x256xf32>
    %40 = vector.broadcast %36 : vector<4x1xf32> to vector<4x256xf32>
    %41 = arith.mulf %40, %39 : vector<4x256xf32>
    %42 = arith.addf %34, %41 : vector<4x256xf32>
    %c3_28 = arith.constant 3 : index
    %c0_29 = arith.constant 0 : index
    %c0_30 = arith.constant 0 : index
    %43 = vector.load %arg3[%c3_28, %c0_29, %c0_30] : memref<9x4x1xf32, #tpu.memory_space<vmem>>, vector<1x4x1xf32>
    %44 = vector.shape_cast %43 : vector<1x4x1xf32> to vector<4x1xf32>
    %c1_i32 = arith.constant 1 : i32
    %45 = tpu.dynamic_rotate %1 by %c1_i32 dim 1 : vector<4x256xf32>, i32 -> vector<4x256xf32>
    %46 = vector.broadcast %9 : vector<1x256xf32> to vector<4x256xf32>
    %47 = arith.mulf %45, %46 : vector<4x256xf32>
    %48 = vector.broadcast %44 : vector<4x1xf32> to vector<4x256xf32>
    %49 = arith.mulf %48, %47 : vector<4x256xf32>
    %50 = arith.addf %42, %49 : vector<4x256xf32>
    %c4 = arith.constant 4 : index
    %c0_31 = arith.constant 0 : index
    %c0_32 = arith.constant 0 : index
    %51 = vector.load %arg3[%c4, %c0_31, %c0_32] : memref<9x4x1xf32, #tpu.memory_space<vmem>>, vector<1x4x1xf32>
    %52 = vector.shape_cast %51 : vector<1x4x1xf32> to vector<4x1xf32>
    %53 = vector.broadcast %52 : vector<4x1xf32> to vector<4x256xf32>
    %54 = arith.mulf %53, %1 : vector<4x256xf32>
    %55 = arith.addf %50, %54 : vector<4x256xf32>
    %c5_33 = arith.constant 5 : index
    %c0_34 = arith.constant 0 : index
    %c0_35 = arith.constant 0 : index
    %56 = vector.load %arg3[%c5_33, %c0_34, %c0_35] : memref<9x4x1xf32, #tpu.memory_space<vmem>>, vector<1x4x1xf32>
    %57 = vector.shape_cast %56 : vector<1x4x1xf32> to vector<4x1xf32>
    %c255_i32 = arith.constant 255 : i32
    %58 = tpu.dynamic_rotate %1 by %c255_i32 dim 1 : vector<4x256xf32>, i32 -> vector<4x256xf32>
    %59 = vector.broadcast %11 : vector<1x256xf32> to vector<4x256xf32>
    %60 = arith.mulf %58, %59 : vector<4x256xf32>
    %61 = vector.broadcast %57 : vector<4x1xf32> to vector<4x256xf32>
    %62 = arith.mulf %61, %60 : vector<4x256xf32>
    %63 = arith.addf %55, %62 : vector<4x256xf32>
    %c6_36 = arith.constant 6 : index
    %c0_37 = arith.constant 0 : index
    %c0_38 = arith.constant 0 : index
    %64 = vector.load %arg3[%c6_36, %c0_37, %c0_38] : memref<9x4x1xf32, #tpu.memory_space<vmem>>, vector<1x4x1xf32>
    %65 = vector.shape_cast %64 : vector<1x4x1xf32> to vector<4x1xf32>
    %c241_i32 = arith.constant 241 : i32
    %66 = tpu.dynamic_rotate %1 by %c241_i32 dim 1 : vector<4x256xf32>, i32 -> vector<4x256xf32>
    %67 = vector.broadcast %13 : vector<1x256xf32> to vector<4x256xf32>
    %68 = arith.mulf %66, %67 : vector<4x256xf32>
    %69 = vector.broadcast %65 : vector<4x1xf32> to vector<4x256xf32>
    %70 = arith.mulf %69, %68 : vector<4x256xf32>
    %71 = arith.addf %63, %70 : vector<4x256xf32>
    %c7_39 = arith.constant 7 : index
    %c0_40 = arith.constant 0 : index
    %c0_41 = arith.constant 0 : index
    %72 = vector.load %arg3[%c7_39, %c0_40, %c0_41] : memref<9x4x1xf32, #tpu.memory_space<vmem>>, vector<1x4x1xf32>
    %73 = vector.shape_cast %72 : vector<1x4x1xf32> to vector<4x1xf32>
    %c240_i32 = arith.constant 240 : i32
    %74 = tpu.dynamic_rotate %1 by %c240_i32 dim 1 : vector<4x256xf32>, i32 -> vector<4x256xf32>
    %75 = vector.broadcast %15 : vector<1x256xf32> to vector<4x256xf32>
    %76 = arith.mulf %74, %75 : vector<4x256xf32>
    %77 = vector.broadcast %73 : vector<4x1xf32> to vector<4x256xf32>
    %78 = arith.mulf %77, %76 : vector<4x256xf32>
    %79 = arith.addf %71, %78 : vector<4x256xf32>
    %c8_42 = arith.constant 8 : index
    %c0_43 = arith.constant 0 : index
    %c0_44 = arith.constant 0 : index
    %80 = vector.load %arg3[%c8_42, %c0_43, %c0_44] : memref<9x4x1xf32, #tpu.memory_space<vmem>>, vector<1x4x1xf32>
    %81 = vector.shape_cast %80 : vector<1x4x1xf32> to vector<4x1xf32>
    %c239_i32 = arith.constant 239 : i32
    %82 = tpu.dynamic_rotate %1 by %c239_i32 dim 1 : vector<4x256xf32>, i32 -> vector<4x256xf32>
    %83 = vector.broadcast %17 : vector<1x256xf32> to vector<4x256xf32>
    %84 = arith.mulf %82, %83 : vector<4x256xf32>
    %85 = vector.broadcast %81 : vector<4x1xf32> to vector<4x256xf32>
    %86 = arith.mulf %85, %84 : vector<4x256xf32>
    %87 = arith.addf %79, %86 : vector<4x256xf32>
    %cst_45 = arith.constant dense<0.000000e+00> : vector<4xf32>
    %88 = vector.multi_reduction <add>, %87, %cst_45 [1] : vector<4x256xf32> to vector<4xf32>
    %89 = vector.shape_cast %88 : vector<4xf32> to vector<4x1xf32>
    %90 = arith.mulf %87, %87 : vector<4x256xf32>
    %cst_46 = arith.constant dense<0.000000e+00> : vector<4xf32>
    %91 = vector.multi_reduction <add>, %90, %cst_46 [1] : vector<4x256xf32> to vector<4xf32>
    %92 = vector.shape_cast %91 : vector<4xf32> to vector<4x1xf32>
    %cst_47 = arith.constant 3.906250e-03 : f32
    %93 = vector.broadcast %cst_47 : f32 to vector<4x1xf32>
    %94 = arith.mulf %89, %93 : vector<4x1xf32>
    %cst_48 = arith.constant 3.906250e-03 : f32
    %95 = vector.broadcast %cst_48 : f32 to vector<4x1xf32>
    %96 = arith.mulf %92, %95 : vector<4x1xf32>
    %97 = arith.mulf %94, %94 : vector<4x1xf32>
    %98 = arith.subf %96, %97 : vector<4x1xf32>
    %cst_49 = arith.constant 0.000000e+00 : f32
    %99 = vector.broadcast %cst_49 : f32 to vector<4x1xf32>
    %100 = arith.maximumf %98, %99 : vector<4x1xf32>
    %101 = vector.broadcast %94 : vector<4x1xf32> to vector<4x256xf32>
    %102 = arith.subf %87, %101 : vector<4x256xf32>
    %cst_50 = arith.constant 9.99999974E-6 : f32
    %103 = vector.broadcast %cst_50 : f32 to vector<4x1xf32>
    %104 = arith.addf %100, %103 : vector<4x1xf32>
    %105 = math.rsqrt %104 : vector<4x1xf32>
    %106 = vector.broadcast %105 : vector<4x1xf32> to vector<4x256xf32>
    %107 = arith.mulf %102, %106 : vector<4x256xf32>
    %cst_51 = arith.constant 0.000000e+00 : f32
    %108 = vector.broadcast %cst_51 : f32 to vector<4x256xf32>
    %109 = arith.cmpf oge, %107, %108 : vector<4x256xf32>
    %cst_52 = arith.constant 2.000000e-01 : f32
    %110 = vector.broadcast %cst_52 : f32 to vector<4x256xf32>
    %111 = arith.mulf %110, %107 : vector<4x256xf32>
    %112 = arith.select %109, %107, %111 : vector<4x256xi1>, vector<4x256xf32>
    %cst_53 = arith.constant 0.000000e+00 : f32
    %113 = vector.broadcast %cst_53 : f32 to vector<8x256xf32>
    %c17_i32_54 = arith.constant 17 : i32
    %114 = tpu.dynamic_rotate %112 by %c17_i32_54 dim 1 : vector<4x256xf32>, i32 -> vector<4x256xf32>
    %115 = vector.broadcast %3 : vector<1x256xf32> to vector<4x256xf32>
    %116 = arith.mulf %114, %115 : vector<4x256xf32>
    %c0_55 = arith.constant 0 : index
    %c0_56 = arith.constant 0 : index
    %c0_57 = arith.constant 0 : index
    %117 = vector.load %arg4[%c0_55, %c0_56, %c0_57] : memref<9x8x4xf32, #tpu.memory_space<vmem>>, vector<1x8x4xf32>
    %118 = vector.shape_cast %117 : vector<1x8x4xf32> to vector<8x4xf32>
    %119 = vector.extract_strided_slice %118 {offsets = [0, 0], sizes = [8, 1], strides = [1, 1]} : vector<8x4xf32> to vector<8x1xf32>
    %120 = vector.extract_strided_slice %116 {offsets = [0, 0], sizes = [1, 256], strides = [1, 1]} : vector<4x256xf32> to vector<1x256xf32>
    %121 = vector.broadcast %119 : vector<8x1xf32> to vector<8x256xf32>
    %122 = vector.broadcast %120 : vector<1x256xf32> to vector<8x256xf32>
    %123 = arith.mulf %121, %122 : vector<8x256xf32>
    %124 = arith.addf %113, %123 : vector<8x256xf32>
    %125 = vector.extract_strided_slice %118 {offsets = [0, 1], sizes = [8, 1], strides = [1, 1]} : vector<8x4xf32> to vector<8x1xf32>
    %126 = vector.extract_strided_slice %116 {offsets = [1, 0], sizes = [1, 256], strides = [1, 1]} : vector<4x256xf32> to vector<1x256xf32>
    %127 = vector.broadcast %125 : vector<8x1xf32> to vector<8x256xf32>
    %128 = vector.broadcast %126 : vector<1x256xf32> to vector<8x256xf32>
    %129 = arith.mulf %127, %128 : vector<8x256xf32>
    %130 = arith.addf %124, %129 : vector<8x256xf32>
    %131 = vector.extract_strided_slice %118 {offsets = [0, 2], sizes = [8, 1], strides = [1, 1]} : vector<8x4xf32> to vector<8x1xf32>
    %132 = vector.extract_strided_slice %116 {offsets = [2, 0], sizes = [1, 256], strides = [1, 1]} : vector<4x256xf32> to vector<1x256xf32>
    %133 = vector.broadcast %131 : vector<8x1xf32> to vector<8x256xf32>
    %134 = vector.broadcast %132 : vector<1x256xf32> to vector<8x256xf32>
    %135 = arith.mulf %133, %134 : vector<8x256xf32>
    %136 = arith.addf %130, %135 : vector<8x256xf32>
    %137 = vector.extract_strided_slice %118 {offsets = [0, 3], sizes = [8, 1], strides = [1, 1]} : vector<8x4xf32> to vector<8x1xf32>
    %138 = vector.extract_strided_slice %116 {offsets = [3, 0], sizes = [1, 256], strides = [1, 1]} : vector<4x256xf32> to vector<1x256xf32>
    %139 = vector.broadcast %137 : vector<8x1xf32> to vector<8x256xf32>
    %140 = vector.broadcast %138 : vector<1x256xf32> to vector<8x256xf32>
    %141 = arith.mulf %139, %140 : vector<8x256xf32>
    %142 = arith.addf %136, %141 : vector<8x256xf32>
    %c16_i32_58 = arith.constant 16 : i32
    %143 = tpu.dynamic_rotate %112 by %c16_i32_58 dim 1 : vector<4x256xf32>, i32 -> vector<4x256xf32>
    %144 = vector.broadcast %5 : vector<1x256xf32> to vector<4x256xf32>
    %145 = arith.mulf %143, %144 : vector<4x256xf32>
    %c1_59 = arith.constant 1 : index
    %c0_60 = arith.constant 0 : index
    %c0_61 = arith.constant 0 : index
    %146 = vector.load %arg4[%c1_59, %c0_60, %c0_61] : memref<9x8x4xf32, #tpu.memory_space<vmem>>, vector<1x8x4xf32>
    %147 = vector.shape_cast %146 : vector<1x8x4xf32> to vector<8x4xf32>
    %148 = vector.extract_strided_slice %147 {offsets = [0, 0], sizes = [8, 1], strides = [1, 1]} : vector<8x4xf32> to vector<8x1xf32>
    %149 = vector.extract_strided_slice %145 {offsets = [0, 0], sizes = [1, 256], strides = [1, 1]} : vector<4x256xf32> to vector<1x256xf32>
    %150 = vector.broadcast %148 : vector<8x1xf32> to vector<8x256xf32>
    %151 = vector.broadcast %149 : vector<1x256xf32> to vector<8x256xf32>
    %152 = arith.mulf %150, %151 : vector<8x256xf32>
    %153 = arith.addf %142, %152 : vector<8x256xf32>
    %154 = vector.extract_strided_slice %147 {offsets = [0, 1], sizes = [8, 1], strides = [1, 1]} : vector<8x4xf32> to vector<8x1xf32>
    %155 = vector.extract_strided_slice %145 {offsets = [1, 0], sizes = [1, 256], strides = [1, 1]} : vector<4x256xf32> to vector<1x256xf32>
    %156 = vector.broadcast %154 : vector<8x1xf32> to vector<8x256xf32>
    %157 = vector.broadcast %155 : vector<1x256xf32> to vector<8x256xf32>
    %158 = arith.mulf %156, %157 : vector<8x256xf32>
    %159 = arith.addf %153, %158 : vector<8x256xf32>
    %160 = vector.extract_strided_slice %147 {offsets = [0, 2], sizes = [8, 1], strides = [1, 1]} : vector<8x4xf32> to vector<8x1xf32>
    %161 = vector.extract_strided_slice %145 {offsets = [2, 0], sizes = [1, 256], strides = [1, 1]} : vector<4x256xf32> to vector<1x256xf32>
    %162 = vector.broadcast %160 : vector<8x1xf32> to vector<8x256xf32>
    %163 = vector.broadcast %161 : vector<1x256xf32> to vector<8x256xf32>
    %164 = arith.mulf %162, %163 : vector<8x256xf32>
    %165 = arith.addf %159, %164 : vector<8x256xf32>
    %166 = vector.extract_strided_slice %147 {offsets = [0, 3], sizes = [8, 1], strides = [1, 1]} : vector<8x4xf32> to vector<8x1xf32>
    %167 = vector.extract_strided_slice %145 {offsets = [3, 0], sizes = [1, 256], strides = [1, 1]} : vector<4x256xf32> to vector<1x256xf32>
    %168 = vector.broadcast %166 : vector<8x1xf32> to vector<8x256xf32>
    %169 = vector.broadcast %167 : vector<1x256xf32> to vector<8x256xf32>
    %170 = arith.mulf %168, %169 : vector<8x256xf32>
    %171 = arith.addf %165, %170 : vector<8x256xf32>
    %c15_i32_62 = arith.constant 15 : i32
    %172 = tpu.dynamic_rotate %112 by %c15_i32_62 dim 1 : vector<4x256xf32>, i32 -> vector<4x256xf32>
    %173 = vector.broadcast %7 : vector<1x256xf32> to vector<4x256xf32>
    %174 = arith.mulf %172, %173 : vector<4x256xf32>
    %c2_63 = arith.constant 2 : index
    %c0_64 = arith.constant 0 : index
    %c0_65 = arith.constant 0 : index
    %175 = vector.load %arg4[%c2_63, %c0_64, %c0_65] : memref<9x8x4xf32, #tpu.memory_space<vmem>>, vector<1x8x4xf32>
    %176 = vector.shape_cast %175 : vector<1x8x4xf32> to vector<8x4xf32>
    %177 = vector.extract_strided_slice %176 {offsets = [0, 0], sizes = [8, 1], strides = [1, 1]} : vector<8x4xf32> to vector<8x1xf32>
    %178 = vector.extract_strided_slice %174 {offsets = [0, 0], sizes = [1, 256], strides = [1, 1]} : vector<4x256xf32> to vector<1x256xf32>
    %179 = vector.broadcast %177 : vector<8x1xf32> to vector<8x256xf32>
    %180 = vector.broadcast %178 : vector<1x256xf32> to vector<8x256xf32>
    %181 = arith.mulf %179, %180 : vector<8x256xf32>
    %182 = arith.addf %171, %181 : vector<8x256xf32>
    %183 = vector.extract_strided_slice %176 {offsets = [0, 1], sizes = [8, 1], strides = [1, 1]} : vector<8x4xf32> to vector<8x1xf32>
    %184 = vector.extract_strided_slice %174 {offsets = [1, 0], sizes = [1, 256], strides = [1, 1]} : vector<4x256xf32> to vector<1x256xf32>
    %185 = vector.broadcast %183 : vector<8x1xf32> to vector<8x256xf32>
    %186 = vector.broadcast %184 : vector<1x256xf32> to vector<8x256xf32>
    %187 = arith.mulf %185, %186 : vector<8x256xf32>
    %188 = arith.addf %182, %187 : vector<8x256xf32>
    %189 = vector.extract_strided_slice %176 {offsets = [0, 2], sizes = [8, 1], strides = [1, 1]} : vector<8x4xf32> to vector<8x1xf32>
    %190 = vector.extract_strided_slice %174 {offsets = [2, 0], sizes = [1, 256], strides = [1, 1]} : vector<4x256xf32> to vector<1x256xf32>
    %191 = vector.broadcast %189 : vector<8x1xf32> to vector<8x256xf32>
    %192 = vector.broadcast %190 : vector<1x256xf32> to vector<8x256xf32>
    %193 = arith.mulf %191, %192 : vector<8x256xf32>
    %194 = arith.addf %188, %193 : vector<8x256xf32>
    %195 = vector.extract_strided_slice %176 {offsets = [0, 3], sizes = [8, 1], strides = [1, 1]} : vector<8x4xf32> to vector<8x1xf32>
    %196 = vector.extract_strided_slice %174 {offsets = [3, 0], sizes = [1, 256], strides = [1, 1]} : vector<4x256xf32> to vector<1x256xf32>
    %197 = vector.broadcast %195 : vector<8x1xf32> to vector<8x256xf32>
    %198 = vector.broadcast %196 : vector<1x256xf32> to vector<8x256xf32>
    %199 = arith.mulf %197, %198 : vector<8x256xf32>
    %200 = arith.addf %194, %199 : vector<8x256xf32>
    %c1_i32_66 = arith.constant 1 : i32
    %201 = tpu.dynamic_rotate %112 by %c1_i32_66 dim 1 : vector<4x256xf32>, i32 -> vector<4x256xf32>
    %202 = vector.broadcast %9 : vector<1x256xf32> to vector<4x256xf32>
    %203 = arith.mulf %201, %202 : vector<4x256xf32>
    %c3_67 = arith.constant 3 : index
    %c0_68 = arith.constant 0 : index
    %c0_69 = arith.constant 0 : index
    %204 = vector.load %arg4[%c3_67, %c0_68, %c0_69] : memref<9x8x4xf32, #tpu.memory_space<vmem>>, vector<1x8x4xf32>
    %205 = vector.shape_cast %204 : vector<1x8x4xf32> to vector<8x4xf32>
    %206 = vector.extract_strided_slice %205 {offsets = [0, 0], sizes = [8, 1], strides = [1, 1]} : vector<8x4xf32> to vector<8x1xf32>
    %207 = vector.extract_strided_slice %203 {offsets = [0, 0], sizes = [1, 256], strides = [1, 1]} : vector<4x256xf32> to vector<1x256xf32>
    %208 = vector.broadcast %206 : vector<8x1xf32> to vector<8x256xf32>
    %209 = vector.broadcast %207 : vector<1x256xf32> to vector<8x256xf32>
    %210 = arith.mulf %208, %209 : vector<8x256xf32>
    %211 = arith.addf %200, %210 : vector<8x256xf32>
    %212 = vector.extract_strided_slice %205 {offsets = [0, 1], sizes = [8, 1], strides = [1, 1]} : vector<8x4xf32> to vector<8x1xf32>
    %213 = vector.extract_strided_slice %203 {offsets = [1, 0], sizes = [1, 256], strides = [1, 1]} : vector<4x256xf32> to vector<1x256xf32>
    %214 = vector.broadcast %212 : vector<8x1xf32> to vector<8x256xf32>
    %215 = vector.broadcast %213 : vector<1x256xf32> to vector<8x256xf32>
    %216 = arith.mulf %214, %215 : vector<8x256xf32>
    %217 = arith.addf %211, %216 : vector<8x256xf32>
    %218 = vector.extract_strided_slice %205 {offsets = [0, 2], sizes = [8, 1], strides = [1, 1]} : vector<8x4xf32> to vector<8x1xf32>
    %219 = vector.extract_strided_slice %203 {offsets = [2, 0], sizes = [1, 256], strides = [1, 1]} : vector<4x256xf32> to vector<1x256xf32>
    %220 = vector.broadcast %218 : vector<8x1xf32> to vector<8x256xf32>
    %221 = vector.broadcast %219 : vector<1x256xf32> to vector<8x256xf32>
    %222 = arith.mulf %220, %221 : vector<8x256xf32>
    %223 = arith.addf %217, %222 : vector<8x256xf32>
    %224 = vector.extract_strided_slice %205 {offsets = [0, 3], sizes = [8, 1], strides = [1, 1]} : vector<8x4xf32> to vector<8x1xf32>
    %225 = vector.extract_strided_slice %203 {offsets = [3, 0], sizes = [1, 256], strides = [1, 1]} : vector<4x256xf32> to vector<1x256xf32>
    %226 = vector.broadcast %224 : vector<8x1xf32> to vector<8x256xf32>
    %227 = vector.broadcast %225 : vector<1x256xf32> to vector<8x256xf32>
    %228 = arith.mulf %226, %227 : vector<8x256xf32>
    %229 = arith.addf %223, %228 : vector<8x256xf32>
    %c4_70 = arith.constant 4 : index
    %c0_71 = arith.constant 0 : index
    %c0_72 = arith.constant 0 : index
    %230 = vector.load %arg4[%c4_70, %c0_71, %c0_72] : memref<9x8x4xf32, #tpu.memory_space<vmem>>, vector<1x8x4xf32>
    %231 = vector.shape_cast %230 : vector<1x8x4xf32> to vector<8x4xf32>
    %232 = vector.extract_strided_slice %231 {offsets = [0, 0], sizes = [8, 1], strides = [1, 1]} : vector<8x4xf32> to vector<8x1xf32>
    %233 = vector.extract_strided_slice %112 {offsets = [0, 0], sizes = [1, 256], strides = [1, 1]} : vector<4x256xf32> to vector<1x256xf32>
    %234 = vector.broadcast %232 : vector<8x1xf32> to vector<8x256xf32>
    %235 = vector.broadcast %233 : vector<1x256xf32> to vector<8x256xf32>
    %236 = arith.mulf %234, %235 : vector<8x256xf32>
    %237 = arith.addf %229, %236 : vector<8x256xf32>
    %238 = vector.extract_strided_slice %231 {offsets = [0, 1], sizes = [8, 1], strides = [1, 1]} : vector<8x4xf32> to vector<8x1xf32>
    %239 = vector.extract_strided_slice %112 {offsets = [1, 0], sizes = [1, 256], strides = [1, 1]} : vector<4x256xf32> to vector<1x256xf32>
    %240 = vector.broadcast %238 : vector<8x1xf32> to vector<8x256xf32>
    %241 = vector.broadcast %239 : vector<1x256xf32> to vector<8x256xf32>
    %242 = arith.mulf %240, %241 : vector<8x256xf32>
    %243 = arith.addf %237, %242 : vector<8x256xf32>
    %244 = vector.extract_strided_slice %231 {offsets = [0, 2], sizes = [8, 1], strides = [1, 1]} : vector<8x4xf32> to vector<8x1xf32>
    %245 = vector.extract_strided_slice %112 {offsets = [2, 0], sizes = [1, 256], strides = [1, 1]} : vector<4x256xf32> to vector<1x256xf32>
    %246 = vector.broadcast %244 : vector<8x1xf32> to vector<8x256xf32>
    %247 = vector.broadcast %245 : vector<1x256xf32> to vector<8x256xf32>
    %248 = arith.mulf %246, %247 : vector<8x256xf32>
    %249 = arith.addf %243, %248 : vector<8x256xf32>
    %250 = vector.extract_strided_slice %231 {offsets = [0, 3], sizes = [8, 1], strides = [1, 1]} : vector<8x4xf32> to vector<8x1xf32>
    %251 = vector.extract_strided_slice %112 {offsets = [3, 0], sizes = [1, 256], strides = [1, 1]} : vector<4x256xf32> to vector<1x256xf32>
    %252 = vector.broadcast %250 : vector<8x1xf32> to vector<8x256xf32>
    %253 = vector.broadcast %251 : vector<1x256xf32> to vector<8x256xf32>
    %254 = arith.mulf %252, %253 : vector<8x256xf32>
    %255 = arith.addf %249, %254 : vector<8x256xf32>
    %c255_i32_73 = arith.constant 255 : i32
    %256 = tpu.dynamic_rotate %112 by %c255_i32_73 dim 1 : vector<4x256xf32>, i32 -> vector<4x256xf32>
    %257 = vector.broadcast %11 : vector<1x256xf32> to vector<4x256xf32>
    %258 = arith.mulf %256, %257 : vector<4x256xf32>
    %c5_74 = arith.constant 5 : index
    %c0_75 = arith.constant 0 : index
    %c0_76 = arith.constant 0 : index
    %259 = vector.load %arg4[%c5_74, %c0_75, %c0_76] : memref<9x8x4xf32, #tpu.memory_space<vmem>>, vector<1x8x4xf32>
    %260 = vector.shape_cast %259 : vector<1x8x4xf32> to vector<8x4xf32>
    %261 = vector.extract_strided_slice %260 {offsets = [0, 0], sizes = [8, 1], strides = [1, 1]} : vector<8x4xf32> to vector<8x1xf32>
    %262 = vector.extract_strided_slice %258 {offsets = [0, 0], sizes = [1, 256], strides = [1, 1]} : vector<4x256xf32> to vector<1x256xf32>
    %263 = vector.broadcast %261 : vector<8x1xf32> to vector<8x256xf32>
    %264 = vector.broadcast %262 : vector<1x256xf32> to vector<8x256xf32>
    %265 = arith.mulf %263, %264 : vector<8x256xf32>
    %266 = arith.addf %255, %265 : vector<8x256xf32>
    %267 = vector.extract_strided_slice %260 {offsets = [0, 1], sizes = [8, 1], strides = [1, 1]} : vector<8x4xf32> to vector<8x1xf32>
    %268 = vector.extract_strided_slice %258 {offsets = [1, 0], sizes = [1, 256], strides = [1, 1]} : vector<4x256xf32> to vector<1x256xf32>
    %269 = vector.broadcast %267 : vector<8x1xf32> to vector<8x256xf32>
    %270 = vector.broadcast %268 : vector<1x256xf32> to vector<8x256xf32>
    %271 = arith.mulf %269, %270 : vector<8x256xf32>
    %272 = arith.addf %266, %271 : vector<8x256xf32>
    %273 = vector.extract_strided_slice %260 {offsets = [0, 2], sizes = [8, 1], strides = [1, 1]} : vector<8x4xf32> to vector<8x1xf32>
    %274 = vector.extract_strided_slice %258 {offsets = [2, 0], sizes = [1, 256], strides = [1, 1]} : vector<4x256xf32> to vector<1x256xf32>
    %275 = vector.broadcast %273 : vector<8x1xf32> to vector<8x256xf32>
    %276 = vector.broadcast %274 : vector<1x256xf32> to vector<8x256xf32>
    %277 = arith.mulf %275, %276 : vector<8x256xf32>
    %278 = arith.addf %272, %277 : vector<8x256xf32>
    %279 = vector.extract_strided_slice %260 {offsets = [0, 3], sizes = [8, 1], strides = [1, 1]} : vector<8x4xf32> to vector<8x1xf32>
    %280 = vector.extract_strided_slice %258 {offsets = [3, 0], sizes = [1, 256], strides = [1, 1]} : vector<4x256xf32> to vector<1x256xf32>
    %281 = vector.broadcast %279 : vector<8x1xf32> to vector<8x256xf32>
    %282 = vector.broadcast %280 : vector<1x256xf32> to vector<8x256xf32>
    %283 = arith.mulf %281, %282 : vector<8x256xf32>
    %284 = arith.addf %278, %283 : vector<8x256xf32>
    %c241_i32_77 = arith.constant 241 : i32
    %285 = tpu.dynamic_rotate %112 by %c241_i32_77 dim 1 : vector<4x256xf32>, i32 -> vector<4x256xf32>
    %286 = vector.broadcast %13 : vector<1x256xf32> to vector<4x256xf32>
    %287 = arith.mulf %285, %286 : vector<4x256xf32>
    %c6_78 = arith.constant 6 : index
    %c0_79 = arith.constant 0 : index
    %c0_80 = arith.constant 0 : index
    %288 = vector.load %arg4[%c6_78, %c0_79, %c0_80] : memref<9x8x4xf32, #tpu.memory_space<vmem>>, vector<1x8x4xf32>
    %289 = vector.shape_cast %288 : vector<1x8x4xf32> to vector<8x4xf32>
    %290 = vector.extract_strided_slice %289 {offsets = [0, 0], sizes = [8, 1], strides = [1, 1]} : vector<8x4xf32> to vector<8x1xf32>
    %291 = vector.extract_strided_slice %287 {offsets = [0, 0], sizes = [1, 256], strides = [1, 1]} : vector<4x256xf32> to vector<1x256xf32>
    %292 = vector.broadcast %290 : vector<8x1xf32> to vector<8x256xf32>
    %293 = vector.broadcast %291 : vector<1x256xf32> to vector<8x256xf32>
    %294 = arith.mulf %292, %293 : vector<8x256xf32>
    %295 = arith.addf %284, %294 : vector<8x256xf32>
    %296 = vector.extract_strided_slice %289 {offsets = [0, 1], sizes = [8, 1], strides = [1, 1]} : vector<8x4xf32> to vector<8x1xf32>
    %297 = vector.extract_strided_slice %287 {offsets = [1, 0], sizes = [1, 256], strides = [1, 1]} : vector<4x256xf32> to vector<1x256xf32>
    %298 = vector.broadcast %296 : vector<8x1xf32> to vector<8x256xf32>
    %299 = vector.broadcast %297 : vector<1x256xf32> to vector<8x256xf32>
    %300 = arith.mulf %298, %299 : vector<8x256xf32>
    %301 = arith.addf %295, %300 : vector<8x256xf32>
    %302 = vector.extract_strided_slice %289 {offsets = [0, 2], sizes = [8, 1], strides = [1, 1]} : vector<8x4xf32> to vector<8x1xf32>
    %303 = vector.extract_strided_slice %287 {offsets = [2, 0], sizes = [1, 256], strides = [1, 1]} : vector<4x256xf32> to vector<1x256xf32>
    %304 = vector.broadcast %302 : vector<8x1xf32> to vector<8x256xf32>
    %305 = vector.broadcast %303 : vector<1x256xf32> to vector<8x256xf32>
    %306 = arith.mulf %304, %305 : vector<8x256xf32>
    %307 = arith.addf %301, %306 : vector<8x256xf32>
    %308 = vector.extract_strided_slice %289 {offsets = [0, 3], sizes = [8, 1], strides = [1, 1]} : vector<8x4xf32> to vector<8x1xf32>
    %309 = vector.extract_strided_slice %287 {offsets = [3, 0], sizes = [1, 256], strides = [1, 1]} : vector<4x256xf32> to vector<1x256xf32>
    %310 = vector.broadcast %308 : vector<8x1xf32> to vector<8x256xf32>
    %311 = vector.broadcast %309 : vector<1x256xf32> to vector<8x256xf32>
    %312 = arith.mulf %310, %311 : vector<8x256xf32>
    %313 = arith.addf %307, %312 : vector<8x256xf32>
    %c240_i32_81 = arith.constant 240 : i32
    %314 = tpu.dynamic_rotate %112 by %c240_i32_81 dim 1 : vector<4x256xf32>, i32 -> vector<4x256xf32>
    %315 = vector.broadcast %15 : vector<1x256xf32> to vector<4x256xf32>
    %316 = arith.mulf %314, %315 : vector<4x256xf32>
    %c7_82 = arith.constant 7 : index
    %c0_83 = arith.constant 0 : index
    %c0_84 = arith.constant 0 : index
    %317 = vector.load %arg4[%c7_82, %c0_83, %c0_84] : memref<9x8x4xf32, #tpu.memory_space<vmem>>, vector<1x8x4xf32>
    %318 = vector.shape_cast %317 : vector<1x8x4xf32> to vector<8x4xf32>
    %319 = vector.extract_strided_slice %318 {offsets = [0, 0], sizes = [8, 1], strides = [1, 1]} : vector<8x4xf32> to vector<8x1xf32>
    %320 = vector.extract_strided_slice %316 {offsets = [0, 0], sizes = [1, 256], strides = [1, 1]} : vector<4x256xf32> to vector<1x256xf32>
    %321 = vector.broadcast %319 : vector<8x1xf32> to vector<8x256xf32>
    %322 = vector.broadcast %320 : vector<1x256xf32> to vector<8x256xf32>
    %323 = arith.mulf %321, %322 : vector<8x256xf32>
    %324 = arith.addf %313, %323 : vector<8x256xf32>
    %325 = vector.extract_strided_slice %318 {offsets = [0, 1], sizes = [8, 1], strides = [1, 1]} : vector<8x4xf32> to vector<8x1xf32>
    %326 = vector.extract_strided_slice %316 {offsets = [1, 0], sizes = [1, 256], strides = [1, 1]} : vector<4x256xf32> to vector<1x256xf32>
    %327 = vector.broadcast %325 : vector<8x1xf32> to vector<8x256xf32>
    %328 = vector.broadcast %326 : vector<1x256xf32> to vector<8x256xf32>
    %329 = arith.mulf %327, %328 : vector<8x256xf32>
    %330 = arith.addf %324, %329 : vector<8x256xf32>
    %331 = vector.extract_strided_slice %318 {offsets = [0, 2], sizes = [8, 1], strides = [1, 1]} : vector<8x4xf32> to vector<8x1xf32>
    %332 = vector.extract_strided_slice %316 {offsets = [2, 0], sizes = [1, 256], strides = [1, 1]} : vector<4x256xf32> to vector<1x256xf32>
    %333 = vector.broadcast %331 : vector<8x1xf32> to vector<8x256xf32>
    %334 = vector.broadcast %332 : vector<1x256xf32> to vector<8x256xf32>
    %335 = arith.mulf %333, %334 : vector<8x256xf32>
    %336 = arith.addf %330, %335 : vector<8x256xf32>
    %337 = vector.extract_strided_slice %318 {offsets = [0, 3], sizes = [8, 1], strides = [1, 1]} : vector<8x4xf32> to vector<8x1xf32>
    %338 = vector.extract_strided_slice %316 {offsets = [3, 0], sizes = [1, 256], strides = [1, 1]} : vector<4x256xf32> to vector<1x256xf32>
    %339 = vector.broadcast %337 : vector<8x1xf32> to vector<8x256xf32>
    %340 = vector.broadcast %338 : vector<1x256xf32> to vector<8x256xf32>
    %341 = arith.mulf %339, %340 : vector<8x256xf32>
    %342 = arith.addf %336, %341 : vector<8x256xf32>
    %c239_i32_85 = arith.constant 239 : i32
    %343 = tpu.dynamic_rotate %112 by %c239_i32_85 dim 1 : vector<4x256xf32>, i32 -> vector<4x256xf32>
    %344 = vector.broadcast %17 : vector<1x256xf32> to vector<4x256xf32>
    %345 = arith.mulf %343, %344 : vector<4x256xf32>
    %c8_86 = arith.constant 8 : index
    %c0_87 = arith.constant 0 : index
    %c0_88 = arith.constant 0 : index
    %346 = vector.load %arg4[%c8_86, %c0_87, %c0_88] : memref<9x8x4xf32, #tpu.memory_space<vmem>>, vector<1x8x4xf32>
    %347 = vector.shape_cast %346 : vector<1x8x4xf32> to vector<8x4xf32>
    %348 = vector.extract_strided_slice %347 {offsets = [0, 0], sizes = [8, 1], strides = [1, 1]} : vector<8x4xf32> to vector<8x1xf32>
    %349 = vector.extract_strided_slice %345 {offsets = [0, 0], sizes = [1, 256], strides = [1, 1]} : vector<4x256xf32> to vector<1x256xf32>
    %350 = vector.broadcast %348 : vector<8x1xf32> to vector<8x256xf32>
    %351 = vector.broadcast %349 : vector<1x256xf32> to vector<8x256xf32>
    %352 = arith.mulf %350, %351 : vector<8x256xf32>
    %353 = arith.addf %342, %352 : vector<8x256xf32>
    %354 = vector.extract_strided_slice %347 {offsets = [0, 1], sizes = [8, 1], strides = [1, 1]} : vector<8x4xf32> to vector<8x1xf32>
    %355 = vector.extract_strided_slice %345 {offsets = [1, 0], sizes = [1, 256], strides = [1, 1]} : vector<4x256xf32> to vector<1x256xf32>
    %356 = vector.broadcast %354 : vector<8x1xf32> to vector<8x256xf32>
    %357 = vector.broadcast %355 : vector<1x256xf32> to vector<8x256xf32>
    %358 = arith.mulf %356, %357 : vector<8x256xf32>
    %359 = arith.addf %353, %358 : vector<8x256xf32>
    %360 = vector.extract_strided_slice %347 {offsets = [0, 2], sizes = [8, 1], strides = [1, 1]} : vector<8x4xf32> to vector<8x1xf32>
    %361 = vector.extract_strided_slice %345 {offsets = [2, 0], sizes = [1, 256], strides = [1, 1]} : vector<4x256xf32> to vector<1x256xf32>
    %362 = vector.broadcast %360 : vector<8x1xf32> to vector<8x256xf32>
    %363 = vector.broadcast %361 : vector<1x256xf32> to vector<8x256xf32>
    %364 = arith.mulf %362, %363 : vector<8x256xf32>
    %365 = arith.addf %359, %364 : vector<8x256xf32>
    %366 = vector.extract_strided_slice %347 {offsets = [0, 3], sizes = [8, 1], strides = [1, 1]} : vector<8x4xf32> to vector<8x1xf32>
    %367 = vector.extract_strided_slice %345 {offsets = [3, 0], sizes = [1, 256], strides = [1, 1]} : vector<4x256xf32> to vector<1x256xf32>
    %368 = vector.broadcast %366 : vector<8x1xf32> to vector<8x256xf32>
    %369 = vector.broadcast %367 : vector<1x256xf32> to vector<8x256xf32>
    %370 = arith.mulf %368, %369 : vector<8x256xf32>
    %371 = arith.addf %365, %370 : vector<8x256xf32>
    %c0_89 = arith.constant 0 : index
    %c0_90 = arith.constant 0 : index
    %372 = vector.load %arg5[%c0_89, %c0_90] : memref<8x4xf32, #tpu.memory_space<vmem>>, vector<8x4xf32>
    %cst_91 = arith.constant 0.000000e+00 : f32
    %373 = vector.broadcast %cst_91 : f32 to vector<8x256xf32>
    %374 = vector.extract_strided_slice %372 {offsets = [0, 0], sizes = [8, 1], strides = [1, 1]} : vector<8x4xf32> to vector<8x1xf32>
    %375 = vector.extract_strided_slice %1 {offsets = [0, 0], sizes = [1, 256], strides = [1, 1]} : vector<4x256xf32> to vector<1x256xf32>
    %376 = vector.broadcast %374 : vector<8x1xf32> to vector<8x256xf32>
    %377 = vector.broadcast %375 : vector<1x256xf32> to vector<8x256xf32>
    %378 = arith.mulf %376, %377 : vector<8x256xf32>
    %379 = arith.addf %373, %378 : vector<8x256xf32>
    %380 = vector.extract_strided_slice %372 {offsets = [0, 1], sizes = [8, 1], strides = [1, 1]} : vector<8x4xf32> to vector<8x1xf32>
    %381 = vector.extract_strided_slice %1 {offsets = [1, 0], sizes = [1, 256], strides = [1, 1]} : vector<4x256xf32> to vector<1x256xf32>
    %382 = vector.broadcast %380 : vector<8x1xf32> to vector<8x256xf32>
    %383 = vector.broadcast %381 : vector<1x256xf32> to vector<8x256xf32>
    %384 = arith.mulf %382, %383 : vector<8x256xf32>
    %385 = arith.addf %379, %384 : vector<8x256xf32>
    %386 = vector.extract_strided_slice %372 {offsets = [0, 2], sizes = [8, 1], strides = [1, 1]} : vector<8x4xf32> to vector<8x1xf32>
    %387 = vector.extract_strided_slice %1 {offsets = [2, 0], sizes = [1, 256], strides = [1, 1]} : vector<4x256xf32> to vector<1x256xf32>
    %388 = vector.broadcast %386 : vector<8x1xf32> to vector<8x256xf32>
    %389 = vector.broadcast %387 : vector<1x256xf32> to vector<8x256xf32>
    %390 = arith.mulf %388, %389 : vector<8x256xf32>
    %391 = arith.addf %385, %390 : vector<8x256xf32>
    %392 = vector.extract_strided_slice %372 {offsets = [0, 3], sizes = [8, 1], strides = [1, 1]} : vector<8x4xf32> to vector<8x1xf32>
    %393 = vector.extract_strided_slice %1 {offsets = [3, 0], sizes = [1, 256], strides = [1, 1]} : vector<4x256xf32> to vector<1x256xf32>
    %394 = vector.broadcast %392 : vector<8x1xf32> to vector<8x256xf32>
    %395 = vector.broadcast %393 : vector<1x256xf32> to vector<8x256xf32>
    %396 = arith.mulf %394, %395 : vector<8x256xf32>
    %397 = arith.addf %391, %396 : vector<8x256xf32>
    %cst_92 = arith.constant dense<0.000000e+00> : vector<8xf32>
    %398 = vector.multi_reduction <add>, %371, %cst_92 [1] : vector<8x256xf32> to vector<8xf32>
    %399 = vector.shape_cast %398 : vector<8xf32> to vector<8x1xf32>
    %400 = arith.mulf %371, %371 : vector<8x256xf32>
    %cst_93 = arith.constant dense<0.000000e+00> : vector<8xf32>
    %401 = vector.multi_reduction <add>, %400, %cst_93 [1] : vector<8x256xf32> to vector<8xf32>
    %402 = vector.shape_cast %401 : vector<8xf32> to vector<8x1xf32>
    %cst_94 = arith.constant 3.906250e-03 : f32
    %403 = vector.broadcast %cst_94 : f32 to vector<8x1xf32>
    %404 = arith.mulf %399, %403 : vector<8x1xf32>
    %cst_95 = arith.constant 3.906250e-03 : f32
    %405 = vector.broadcast %cst_95 : f32 to vector<8x1xf32>
    %406 = arith.mulf %402, %405 : vector<8x1xf32>
    %407 = arith.mulf %404, %404 : vector<8x1xf32>
    %408 = arith.subf %406, %407 : vector<8x1xf32>
    %cst_96 = arith.constant 0.000000e+00 : f32
    %409 = vector.broadcast %cst_96 : f32 to vector<8x1xf32>
    %410 = arith.maximumf %408, %409 : vector<8x1xf32>
    %411 = vector.broadcast %404 : vector<8x1xf32> to vector<8x256xf32>
    %412 = arith.subf %371, %411 : vector<8x256xf32>
    %cst_97 = arith.constant 9.99999974E-6 : f32
    %413 = vector.broadcast %cst_97 : f32 to vector<8x1xf32>
    %414 = arith.addf %410, %413 : vector<8x1xf32>
    %415 = math.rsqrt %414 : vector<8x1xf32>
    %416 = vector.broadcast %415 : vector<8x1xf32> to vector<8x256xf32>
    %417 = arith.mulf %412, %416 : vector<8x256xf32>
    %cst_98 = arith.constant dense<0.000000e+00> : vector<8xf32>
    %418 = vector.multi_reduction <add>, %397, %cst_98 [1] : vector<8x256xf32> to vector<8xf32>
    %419 = vector.shape_cast %418 : vector<8xf32> to vector<8x1xf32>
    %420 = arith.mulf %397, %397 : vector<8x256xf32>
    %cst_99 = arith.constant dense<0.000000e+00> : vector<8xf32>
    %421 = vector.multi_reduction <add>, %420, %cst_99 [1] : vector<8x256xf32> to vector<8xf32>
    %422 = vector.shape_cast %421 : vector<8xf32> to vector<8x1xf32>
    %cst_100 = arith.constant 3.906250e-03 : f32
    %423 = vector.broadcast %cst_100 : f32 to vector<8x1xf32>
    %424 = arith.mulf %419, %423 : vector<8x1xf32>
    %cst_101 = arith.constant 3.906250e-03 : f32
    %425 = vector.broadcast %cst_101 : f32 to vector<8x1xf32>
    %426 = arith.mulf %422, %425 : vector<8x1xf32>
    %427 = arith.mulf %424, %424 : vector<8x1xf32>
    %428 = arith.subf %426, %427 : vector<8x1xf32>
    %cst_102 = arith.constant 0.000000e+00 : f32
    %429 = vector.broadcast %cst_102 : f32 to vector<8x1xf32>
    %430 = arith.maximumf %428, %429 : vector<8x1xf32>
    %431 = vector.broadcast %424 : vector<8x1xf32> to vector<8x256xf32>
    %432 = arith.subf %397, %431 : vector<8x256xf32>
    %cst_103 = arith.constant 9.99999974E-6 : f32
    %433 = vector.broadcast %cst_103 : f32 to vector<8x1xf32>
    %434 = arith.addf %430, %433 : vector<8x1xf32>
    %435 = math.rsqrt %434 : vector<8x1xf32>
    %436 = vector.broadcast %435 : vector<8x1xf32> to vector<8x256xf32>
    %437 = arith.mulf %432, %436 : vector<8x256xf32>
    %438 = arith.addf %417, %437 : vector<8x256xf32>
    %cst_104 = arith.constant 0.000000e+00 : f32
    %439 = vector.broadcast %cst_104 : f32 to vector<8x256xf32>
    %440 = arith.cmpf oge, %438, %439 : vector<8x256xf32>
    %cst_105 = arith.constant 2.000000e-01 : f32
    %441 = vector.broadcast %cst_105 : f32 to vector<8x256xf32>
    %442 = arith.mulf %441, %438 : vector<8x256xf32>
    %443 = arith.select %440, %438, %442 : vector<8x256xi1>, vector<8x256xf32>
    %c0_106 = arith.constant 0 : index
    %c0_107 = arith.constant 0 : index
    %c0_108 = arith.constant 0 : index
    %444 = vector.load %arg6[%c0_106, %c0_107, %c0_108] : memref<1x8x256xf32, #tpu.memory_space<vmem>>, vector<1x8x256xf32>
    %445 = vector.shape_cast %444 : vector<1x8x256xf32> to vector<8x256xf32>
    %446 = vector.shape_cast %443 : vector<8x256xf32> to vector<1x8x256xf32>
    tpu.vector_store %arg6[%c0_106, %c0_107, %c0_108], %446 {strides = array<i32>} : memref<1x8x256xf32, #tpu.memory_space<vmem>>, vector<1x8x256xf32>,
    return
  }
  func.func @transform_0(%arg0: i32) -> (i32, i32, i32) {
    %c0_i32 = arith.constant 0 : i32
    %c0_i32_0 = arith.constant 0 : i32
    %c0_i32_1 = arith.constant 0 : i32
    return %arg0, %c0_i32, %c0_i32_0 : i32, i32, i32
  }
  func.func @transform_1(%arg0: i32) -> (i32, i32, i32) {
    %c0_i32 = arith.constant 0 : i32
    %c0_i32_0 = arith.constant 0 : i32
    %c0_i32_1 = arith.constant 0 : i32
    %c0_i32_2 = arith.constant 0 : i32
    return %c0_i32, %c0_i32_0, %c0_i32_1 : i32, i32, i32
  }
  func.func @transform_2(%arg0: i32) -> (i32, i32, i32) {
    %c0_i32 = arith.constant 0 : i32
    %c0_i32_0 = arith.constant 0 : i32
    %c0_i32_1 = arith.constant 0 : i32
    %c0_i32_2 = arith.constant 0 : i32
    return %c0_i32, %c0_i32_0, %c0_i32_1 : i32, i32, i32
  }
  func.func @transform_3(%arg0: i32) -> (i32, i32, i32) {
    %c0_i32 = arith.constant 0 : i32
    %c0_i32_0 = arith.constant 0 : i32
    %c0_i32_1 = arith.constant 0 : i32
    %c0_i32_2 = arith.constant 0 : i32
    return %c0_i32, %c0_i32_0, %c0_i32_1 : i32, i32, i32
  }
  func.func @transform_4(%arg0: i32) -> (i32, i32) {
    %c0_i32 = arith.constant 0 : i32
    %c0_i32_0 = arith.constant 0 : i32
    %c0_i32_1 = arith.constant 0 : i32
    return %c0_i32, %c0_i32_0 : i32, i32
  }
  func.func @transform_5(%arg0: i32) -> (i32, i32, i32) {
    %c0_i32 = arith.constant 0 : i32
    %c0_i32_0 = arith.constant 0 : i32
    %c0_i32_1 = arith.constant 0 : i32
    return %arg0, %c0_i32, %c0_i32_0 : i32, i32, i32
  }
}

</mosaic_0001>

<llo_original>
// kernel: tpu_custom_call.1
$region0: #{tpu_custom_call.1}
  #allocation0 [shape = 'u32[]', space=smem, size = 0x4, offset = 0x4, fixed_abs, tag = 'smem constant byte address 0x4 - core index']
  #allocation1 [shape = 'u32[144,128]{1,0:T(1,128)}', space=vmem, size = 0x12000, scoped, tag = 'internal scratch']
  %s0 = inlined_call_operand.vmem [shape: f32[2,4,256], index: 0, kind: input, shape index: {}]
  %s1 = inlined_call_operand.vmem [shape: f32[9,1,256], index: 1, kind: input, shape index: {}]
  %s2 = inlined_call_operand.vmem [shape: f32[9,4,1], index: 2, kind: input, shape index: {}]
  %s3 = inlined_call_operand.vmem [shape: f32[9,8,4], index: 3, kind: input, shape index: {}]
  %s4 = inlined_call_operand.vmem [shape: f32[8,4], index: 4, kind: input, shape index: {}]
  %s5 = inlined_call_operand.hbm [shape: f32[2,8,256], index: 5, kind: output, shape index: {}]
  %s6 = sld [smem:[#allocation0]]
  $region53: #{tpu_custom_call.1} parent=0
    _
  %s8 = ssub.s32 1, %s6
  %s9 = scalar_select 0, %s8, %s6
  $region1: #{tpu_custom_call.1} parent=0
    #allocation2 [shape = 'u8[16384]{0}', space=vmem, size = 0x4000, scoped, tag = 'output window, operand 0']
    #allocation3 [shape = 's32[2]{0}', space=sflag, size = 0x8, scoped, tag = 'scoped memory for tpu_custom_call.1']
    %10 = vsyncpa [#allocation3], 0
    %s11 = scalar_lea.sflag [#allocation3], 1
    %12 = vsyncpa %s11, 0
    loop: start=0, step=1, limit=4
    $region2: #{tpu_custom_call.1} parent=1 // loop_pre_header
      _
    $region3: #{tpu_custom_call.1} parent=1 // loop_header
      %s14 = sphi 0, %s18
      %p15 = scmp.ge.s32.totalorder %s14, 4
      %s24 = sphi 0, %s26
      %s27 = sphi 0, %s24
      %s28 = sphi 0, %s27
      %s44 = sphi 0, %s28
      %s48 = sphi 0, %s48
      %s50 = sphi 0, %s48
      %s51 = sphi 0, %s50
      %s65 = sphi 0, %s51
      %s69 = sphi 0, %s69
      %s71 = sphi 0, %s69
      %s72 = sphi 0, %s71
      %s86 = sphi 0, %s72
      %s90 = sphi 0, %s90
      %s92 = sphi 0, %s90
      %s93 = sphi 0, %s92
      %s107 = sphi 0, %s93
      %s111 = sphi 0, %s111
      %s113 = sphi 0, %s111
      %s114 = sphi 0, %s113
      %s128 = sphi 0, %s114
      %s134 = sphi 0, %s136
      %s137 = sphi 0, %s134
      %s138 = sphi 0, %s137
      %s154 = sphi 0, %s138
    $region4: #{tpu_custom_call.1} parent=1 // loop_header_branch
      %17 = sbr.rel (%p15) target = $region8
    $region5: #{tpu_custom_call.1} parent=1 // loop_body
      %s19 = ssub.s32 %s14, 1
      %s20 = ssub.s32 %s14, 2
      %s21 = sadd.s32 %s14, 1
      %s22 = ssub.s32 %s14, %s21
      %p23 = scmp.eq.s32.totalorder %s22, 0
      %s25 = sadd.s32 %s24, 1
      %s26 = scalar_select %p23, %s24, %s25
      %p29 = pneg %p23
      %p30 = scmp.eq.s32.totalorder %s14, 1
      %p31 = por %p29, %p30
      %p32 = scmp.ne.s32.totalorder %s24, %s27
      %p33 = scmp.eq.s32.totalorder %s14, 0
      %p34 = por %p32, %p33
      %p35 = scmp.ne.s32.totalorder %s24, %s27
      %p36 = scmp.eq.s32.totalorder %s19, 1
      %p37 = por %p35, %p36
      %p38 = scmp.ne.s32.totalorder %s27, %s28
      %p39 = scmp.eq.s32.totalorder %s19, 0
      %p40 = por %p38, %p39
      %p41 = scmp.ne.s32.totalorder %s27, %s28
      %p42 = scmp.eq.s32.totalorder %s20, 1
      %p43 = por %p41, %p42
      %p45 = scmp.ne.s32.totalorder %s28, %s44
      %p46 = scmp.eq.s32.totalorder %s20, 0
      %p47 = por %p45, %p46
      %s49 = sadd.s32 %s48, 1
      %p52 = scmp.eq.s32.totalorder %s14, 1
      %p53 = scmp.ne.s32.totalorder %s48, %s50
      %p54 = scmp.eq.s32.totalorder %s14, 0
      %p55 = por %p53, %p54
      %p56 = scmp.ne.s32.totalorder %s48, %s50
      %p57 = scmp.eq.s32.totalorder %s19, 1
      %p58 = por %p56, %p57
      %p59 = scmp.ne.s32.totalorder %s50, %s51
      %p60 = scmp.eq.s32.totalorder %s19, 0
      %p61 = por %p59, %p60
      %p62 = scmp.ne.s32.totalorder %s50, %s51
      %p63 = scmp.eq.s32.totalorder %s20, 1
      %p64 = por %p62, %p63
      %p66 = scmp.ne.s32.totalorder %s51, %s65
      %p67 = scmp.eq.s32.totalorder %s20, 0
      %p68 = por %p66, %p67
      %s70 = sadd.s32 %s69, 1
      %p73 = scmp.eq.s32.totalorder %s14, 1
      %p74 = scmp.ne.s32.totalorder %s69, %s71
      %p75 = scmp.eq.s32.totalorder %s14, 0
      %p76 = por %p74, %p75
      %p77 = scmp.ne.s32.totalorder %s69, %s71
      %p78 = scmp.eq.s32.totalorder %s19, 1
      %p79 = por %p77, %p78
      %p80 = scmp.ne.s32.totalorder %s71, %s72
      %p81 = scmp.eq.s32.totalorder %s19, 0
      %p82 = por %p80, %p81
      %p83 = scmp.ne.s32.totalorder %s71, %s72
      %p84 = scmp.eq.s32.totalorder %s20, 1
      %p85 = por %p83, %p84
      %p87 = scmp.ne.s32.totalorder %s72, %s86
      %p88 = scmp.eq.s32.totalorder %s20, 0
      %p89 = por %p87, %p88
      %s91 = sadd.s32 %s90, 1
      %p94 = scmp.eq.s32.totalorder %s14, 1
      %p95 = scmp.ne.s32.totalorder %s90, %s92
      %p96 = scmp.eq.s32.totalorder %s14, 0
      %p97 = por %p95, %p96
      %p98 = scmp.ne.s32.totalorder %s90, %s92
      %p99 = scmp.eq.s32.totalorder %s19, 1
      %p100 = por %p98, %p99
      %p101 = scmp.ne.s32.totalorder %s92, %s93
      %p102 = scmp.eq.s32.totalorder %s19, 0
      %p103 = por %p101, %p102
      %p104 = scmp.ne.s32.totalorder %s92, %s93
      %p105 = scmp.eq.s32.totalorder %s20, 1
      %p106 = por %p104, %p105
      %p108 = scmp.ne.s32.totalorder %s93, %s107
      %p109 = scmp.eq.s32.totalorder %s20, 0
      %p110 = por %p108, %p109
      %s112 = sadd.s32 %s111, 1
      %p115 = scmp.eq.s32.totalorder %s14, 1
      %p116 = scmp.ne.s32.totalorder %s111, %s113
      %p117 = scmp.eq.s32.totalorder %s14, 0
      %p118 = por %p116, %p117
      %p119 = scmp.ne.s32.totalorder %s111, %s113
      %p120 = scmp.eq.s32.totalorder %s19, 1
      %p121 = por %p119, %p120
      %p122 = scmp.ne.s32.totalorder %s113, %s114
      %p123 = scmp.eq.s32.totalorder %s19, 0
      %p124 = por %p122, %p123
      %p125 = scmp.ne.s32.totalorder %s113, %s114
      %p126 = scmp.eq.s32.totalorder %s20, 1
      %p127 = por %p125, %p126
      %p129 = scmp.ne.s32.totalorder %s114, %s128
      %p130 = scmp.eq.s32.totalorder %s20, 0
      %p131 = por %p129, %p130
      %s132 = ssub.s32 %s14, %s21
      %p133 = scmp.eq.s32.totalorder %s132, 0
      %s135 = sadd.s32 %s134, 1
      %s136 = scalar_select %p133, %s134, %s135
      %p139 = pneg %p133
      %p140 = scmp.eq.s32.totalorder %s14, 1
      %p141 = por %p139, %p140
      %p142 = scmp.ne.s32.totalorder %s134, %s137
      %p143 = scmp.eq.s32.totalorder %s14, 0
      %p144 = por %p142, %p143
      %p145 = scmp.ne.s32.totalorder %s134, %s137
      %p146 = scmp.eq.s32.totalorder %s19, 1
      %p147 = por %p145, %p146
      %p148 = scmp.ne.s32.totalorder %s137, %s138
      %p149 = scmp.eq.s32.totalorder %s19, 0
      %p150 = por %p148, %p149
      %p151 = scmp.ne.s32.totalorder %s137, %s138
      %p152 = scmp.eq.s32.totalorder %s20, 1
      %p153 = por %p151, %p152
      %p155 = scmp.ne.s32.totalorder %s138, %s154
      %p156 = scmp.eq.s32.totalorder %s20, 0
      %p157 = por %p155, %p156
      %p158 = scmp.le.s32.totalorder 1, %s14
      %p159 = scmp.lt.s32.totalorder %s14, 3
      %p160 = pnand %p158, %p159
      %p161 = pneg %p160
      // Predicated region
      $region9: #{tpu_custom_call.1} parent=5 // pred_check
        _
      $region10: #{tpu_custom_call.1} parent=5 // pred_check_branch
        %163 = sbr.rel (%p160) target = $region12
      $region11: #{tpu_custom_call.1} parent=5 // pred_region
        %s164 = ssub.s32 %s14, 1
        // Predicated region
        $region13: #{tpu_custom_call.1} parent=11 // pred_check
          %p165 = pneg %p61
        $region14: #{tpu_custom_call.1} parent=11 // pred_check_branch
          %167 = sbr.rel (%p165) target = $region16
        $region15: #{tpu_custom_call.1} parent=11 // pred_region
          _
        $region16: #{tpu_custom_call.1} parent=11 // pred_fallthru
          _
        // Predicated region
        $region17: #{tpu_custom_call.1} parent=11 // pred_check
          %p168 = pneg %p82
        $region18: #{tpu_custom_call.1} parent=11 // pred_check_branch
          %170 = sbr.rel (%p168) target = $region20
        $region19: #{tpu_custom_call.1} parent=11 // pred_region
          _
        $region20: #{tpu_custom_call.1} parent=11 // pred_fallthru
          _
        // Predicated region
        $region21: #{tpu_custom_call.1} parent=11 // pred_check
          %p171 = pneg %p103
        $region22: #{tpu_custom_call.1} parent=11 // pred_check_branch
          %173 = sbr.rel (%p171) target = $region24
        $region23: #{tpu_custom_call.1} parent=11 // pred_region
          _
        $region24: #{tpu_custom_call.1} parent=11 // pred_fallthru
          _
        // Predicated region
        $region25: #{tpu_custom_call.1} parent=11 // pred_check
          %p174 = pneg %p124
        $region26: #{tpu_custom_call.1} parent=11 // pred_check_branch
          %176 = sbr.rel (%p174) target = $region28
        $region27: #{tpu_custom_call.1} parent=11 // pred_region
          _
        $region28: #{tpu_custom_call.1} parent=11 // pred_fallthru
          _
      $region12: #{tpu_custom_call.1} parent=5 // pred_fallthru
        _
      %p177 = scmp.lt.s32.totalorder %s14, 2
      // Predicated region
      $region29: #{tpu_custom_call.1} parent=5 // pred_check
        %p178 = pneg %p177
      $region30: #{tpu_custom_call.1} parent=5 // pred_check_branch
        %180 = sbr.rel (%p178) target = $region32
      $region31: #{tpu_custom_call.1} parent=5 // pred_region
        // Predicated region
        $region33: #{tpu_custom_call.1} parent=31 // pred_check
          %p181 = pneg %p34
        $region34: #{tpu_custom_call.1} parent=31 // pred_check_branch
          %183 = sbr.rel (%p181) target = $region36
        $region35: #{tpu_custom_call.1} parent=31 // pred_region
          %p184 = scmp.lt.s32.totalorder %s14, 1
          %s185 = scalar_select %p184, %s14, 1
          %s186 = smul.addr %s185, 2
          %s187 = smul.addr %s186, 4
          %s188 = scalar_lea.vmem %s0, %s187
        $region36: #{tpu_custom_call.1} parent=31 // pred_fallthru
          _
      $region32: #{tpu_custom_call.1} parent=5 // pred_fallthru
        _
      %p189 = scmp.le.s32.totalorder 1, %s14
      %p190 = scmp.lt.s32.totalorder %s14, 3
      %p191 = pnand %p189, %p190
      %p192 = pneg %p191
      // Predicated region
      $region37: #{tpu_custom_call.1} parent=5 // pred_check
        _
      $region38: #{tpu_custom_call.1} parent=5 // pred_check_branch
        %194 = sbr.rel (%p191) target = $region40
      $region39: #{tpu_custom_call.1} parent=5 // pred_region
        %s195 = ssub.s32 %s14, 1
        %p196 = scmp.lt.s32.totalorder %s19, 1
        %s197 = scalar_select %p196, %s19, 1
        %s198 = smul.addr %s197, 2
        %s199 = smul.addr %s198, 4
        %s200 = scalar_lea.vmem %s0, %s199
        %p201 = pneg %p40
        %p202 = pneg %p37
        %p203 = pneg %p61
        %p204 = pneg %p58
        %p205 = pneg %p82
        %p206 = pneg %p79
        %p207 = pneg %p103
        %p208 = pneg %p100
        %p209 = pneg %p124
        %p210 = pneg %p121
        %p211 = pneg %p150
        %p212 = pneg %p147
        %s213 = sand.u32 %s137, 1
        %s214 = scalar_lea.sflag [#allocation3], %s213
        %s215 = sand.u32 %s137, 1
        %s216 = smul.addr %s215, 16
        %s217 = scalar_lea.vmem [#allocation2], %s216
        %p218 = scmp.lt.s32.totalorder %s19, 1
        %s219 = scalar_select %p218, %s19, 1
        %s220 = smul.addr %s219, 2
        %s221 = smul.addr %s220, 4
        %s222 = scalar_lea.vmem %s0, %s221
        %v223 = vld [vmem:[%s222] sm:$0xff]
        %v224 = vld [vmem:[%s1] sm:$0x3]
        %s225 = scalar_lea.vmem %s1, 2
        %v226 = vld [vmem:[%s225] sm:$0x3]
        %s227 = scalar_lea.vmem %s1, 4
        %v228 = vld [vmem:[%s227] sm:$0x3]
        %s229 = scalar_lea.vmem %s1, 6
        %v230 = vld [vmem:[%s229] sm:$0x3]
        %s231 = scalar_lea.vmem %s1, 10
        %v232 = vld [vmem:[%s231] sm:$0x3]
        %s233 = scalar_lea.vmem %s1, 12
        %v234 = vld [vmem:[%s233] sm:$0x3]
        %s235 = scalar_lea.vmem %s1, 14
        %v236 = vld [vmem:[%s235] sm:$0x3]
        %s237 = scalar_lea.vmem %s1, 16
        %v238 = vld [vmem:[%s237] sm:$0x3]
        %v239 = vld [vmem:[%s2] sm:$0xf]
        %v241 = vcombine.high %v223, %v223
        %243 = vrot.lane.b32.xlu0 %v223, 17
        %v244 = vpop.permute.xlu0 %243
        %245 = vrot.lane.b32.xlu0 %v241, 17
        %v246 = vpop.permute.xlu0 %245
        %v247 = vlaneseq
        %v248 = vand.u32 %v247, 127
        %vm249 = vcmp.lt.s32.totalorder %v248, 17
        %v250 = vsel %vm249, %v244, %v246
        %v251 = vsel %vm249, %v246, %v244
        %v253 = vlaneseq
        %v254 = vshrl.u32 %v253, 7
        %v255 = vsub.s32 0, %v254
        %v256 = vrot.slane %v224, %v255
        %v257 = vlaneseq
        %v258 = vshrl.u32 %v257, 7
        %v259 = vsub.s32 1, %v258
        %v260 = vrot.slane %v224, %v259
        %v263 = vmul.f32 %v251, %v256
        %v264 = vmul.f32 %v250, %v260
        %266 = vset.pattern.permute.xlu0 0
        %267 = vperm.xlu0 %266, %v239
        %v268 = vpop.permute.xlu0 %267
        %v270 = vmul.f32 %v268, %v263
        %v271 = vmul.f32 %v268, %v264
        %v272 = vadd.f32 %v270, 0.0
        %v273 = vadd.f32 %v271, 0.0
        %s274 = scalar_lea.vmem %s2, 4
        %v275 = vld [vmem:[%s274] sm:$0xf]
        %276 = vrot.lane.b32.xlu0 %v223, 16
        %v277 = vpop.permute.xlu0 %276
        %278 = vrot.lane.b32.xlu0 %v241, 16
        %v279 = vpop.permute.xlu0 %278
        %vm280 = vcmp.lt.s32.totalorder %v248, 16
        %v281 = vsel %vm280, %v277, %v279
        %v282 = vsel %vm280, %v279, %v277
        %v284 = vlaneseq
        %v285 = vshrl.u32 %v284, 7
        %v286 = vsub.s32 0, %v285
        %v287 = vrot.slane %v226, %v286
        %v288 = vlaneseq
        %v289 = vshrl.u32 %v288, 7
        %v290 = vsub.s32 1, %v289
        %v291 = vrot.slane %v226, %v290
        %v294 = vmul.f32 %v282, %v287
        %v295 = vmul.f32 %v281, %v291
        %297 = vset.pattern.permute.xlu0 0
        %298 = vperm.xlu0 %297, %v275
        %v299 = vpop.permute.xlu0 %298
        %v301 = vmul.f32 %v299, %v294
        %v302 = vmul.f32 %v299, %v295
        %v303 = vadd.f32 %v272, %v301
        %v304 = vadd.f32 %v273, %v302
        %s305 = scalar_lea.vmem %s2, 8
        %v306 = vld [vmem:[%s305] sm:$0xf]
        %307 = vrot.lane.b32.xlu0 %v223, 15
        %v308 = vpop.permute.xlu0 %307
        %309 = vrot.lane.b32.xlu0 %v241, 15
        %v310 = vpop.permute.xlu0 %309
        %vm311 = vcmp.lt.s32.totalorder %v248, 15
        %v312 = vsel %vm311, %v308, %v310
        %v313 = vsel %vm311, %v310, %v308
        %v315 = vlaneseq
        %v316 = vshrl.u32 %v315, 7
        %v317 = vsub.s32 0, %v316
        %v318 = vrot.slane %v228, %v317
        %v319 = vlaneseq
        %v320 = vshrl.u32 %v319, 7
        %v321 = vsub.s32 1, %v320
        %v322 = vrot.slane %v228, %v321
        %v325 = vmul.f32 %v313, %v318
        %v326 = vmul.f32 %v312, %v322
        %328 = vset.pattern.permute.xlu0 0
        %329 = vperm.xlu0 %328, %v306
        %v330 = vpop.permute.xlu0 %329
        %v332 = vmul.f32 %v330, %v325
        %v333 = vmul.f32 %v330, %v326
        %v334 = vadd.f32 %v303, %v332
        %v335 = vadd.f32 %v304, %v333
        %s336 = scalar_lea.vmem %s2, 12
        %v337 = vld [vmem:[%s336] sm:$0xf]
        %338 = vrot.lane.b32.xlu0 %v223, 1
        %v339 = vpop.permute.xlu0 %338
        %340 = vrot.lane.b32.xlu0 %v241, 1
        %v341 = vpop.permute.xlu0 %340
        %vm342 = vcmp.lt.s32.totalorder %v248, 1
        %v343 = vsel %vm342, %v339, %v341
        %v344 = vsel %vm342, %v341, %v339
        %v346 = vlaneseq
        %v347 = vshrl.u32 %v346, 7
        %v348 = vsub.s32 0, %v347
        %v349 = vrot.slane %v230, %v348
        %v350 = vlaneseq
        %v351 = vshrl.u32 %v350, 7
        %v352 = vsub.s32 1, %v351
        %v353 = vrot.slane %v230, %v352
        %v356 = vmul.f32 %v344, %v349
        %v357 = vmul.f32 %v343, %v353
        %359 = vset.pattern.permute.xlu0 0
        %360 = vperm.xlu0 %359, %v337
        %v361 = vpop.permute.xlu0 %360
        %v363 = vmul.f32 %v361, %v356
        %v364 = vmul.f32 %v361, %v357
        %v365 = vadd.f32 %v334, %v363
        %v366 = vadd.f32 %v335, %v364
        %s367 = scalar_lea.vmem %s2, 16
        %v368 = vld [vmem:[%s367] sm:$0xf]
        %370 = vset.pattern.permute.xlu0 0
        %371 = vperm.xlu0 %370, %v368
        %v372 = vpop.permute.xlu0 %371
        %v374 = vmul.f32 %v372, %v223
        %v375 = vmul.f32 %v372, %v241
        %v376 = vadd.f32 %v365, %v374
        %v377 = vadd.f32 %v366, %v375
        %s378 = scalar_lea.vmem %s2, 20
        %v379 = vld [vmem:[%s378] sm:$0xf]
        %380 = vrot.lane.b32.xlu0 %v223, 127
        %v381 = vpop.permute.xlu0 %380
        %382 = vrot.lane.b32.xlu0 %v241, 127
        %v383 = vpop.permute.xlu0 %382
        %vm384 = vcmp.lt.s32.totalorder %v248, 127
        %v385 = vsel %vm384, %v381, %v383
        %v386 = vsel %vm384, %v383, %v381
        %v388 = vlaneseq
        %v389 = vshrl.u32 %v388, 7
        %v390 = vsub.s32 0, %v389
        %v391 = vrot.slane %v232, %v390
        %v392 = vlaneseq
        %v393 = vshrl.u32 %v392, 7
        %v394 = vsub.s32 1, %v393
        %v395 = vrot.slane %v232, %v394
        %v398 = vmul.f32 %v385, %v391
        %v399 = vmul.f32 %v386, %v395
        %401 = vset.pattern.permute.xlu0 0
        %402 = vperm.xlu0 %401, %v379
        %v403 = vpop.permute.xlu0 %402
        %v405 = vmul.f32 %v403, %v398
        %v406 = vmul.f32 %v403, %v399
        %v407 = vadd.f32 %v376, %v405
        %v408 = vadd.f32 %v377, %v406
        %s409 = scalar_lea.vmem %s2, 24
        %v410 = vld [vmem:[%s409] sm:$0xf]
        %411 = vrot.lane.b32.xlu0 %v223, 113
        %v412 = vpop.permute.xlu0 %411
        %413 = vrot.lane.b32.xlu0 %v241, 113
        %v414 = vpop.permute.xlu0 %413
        %vm415 = vcmp.lt.s32.totalorder %v248, 113
        %v416 = vsel %vm415, %v412, %v414
        %v417 = vsel %vm415, %v414, %v412
        %v419 = vlaneseq
        %v420 = vshrl.u32 %v419, 7
        %v421 = vsub.s32 0, %v420
        %v422 = vrot.slane %v234, %v421
        %v423 = vlaneseq
        %v424 = vshrl.u32 %v423, 7
        %v425 = vsub.s32 1, %v424
        %v426 = vrot.slane %v234, %v425
        %v429 = vmul.f32 %v416, %v422
        %v430 = vmul.f32 %v417, %v426
        %432 = vset.pattern.permute.xlu0 0
        %433 = vperm.xlu0 %432, %v410
        %v434 = vpop.permute.xlu0 %433
        %v436 = vmul.f32 %v434, %v429
        %v437 = vmul.f32 %v434, %v430
        %v438 = vadd.f32 %v407, %v436
        %v439 = vadd.f32 %v408, %v437
        %s440 = scalar_lea.vmem %s2, 28
        %v441 = vld [vmem:[%s440] sm:$0xf]
        %442 = vrot.lane.b32.xlu0 %v223, 112
        %v443 = vpop.permute.xlu0 %442
        %444 = vrot.lane.b32.xlu0 %v241, 112
        %v445 = vpop.permute.xlu0 %444
        %vm446 = vcmp.lt.s32.totalorder %v248, 112
        %v447 = vsel %vm446, %v443, %v445
        %v448 = vsel %vm446, %v445, %v443
        %v450 = vlaneseq
        %v451 = vshrl.u32 %v450, 7
        %v452 = vsub.s32 0, %v451
        %v453 = vrot.slane %v236, %v452
        %v454 = vlaneseq
        %v455 = vshrl.u32 %v454, 7
        %v456 = vsub.s32 1, %v455
        %v457 = vrot.slane %v236, %v456
        %v460 = vmul.f32 %v447, %v453
        %v461 = vmul.f32 %v448, %v457
        %463 = vset.pattern.permute.xlu0 0
        %464 = vperm.xlu0 %463, %v441
        %v465 = vpop.permute.xlu0 %464
        %v467 = vmul.f32 %v465, %v460
        %v468 = vmul.f32 %v465, %v461
        %v469 = vadd.f32 %v438, %v467
        %v470 = vadd.f32 %v439, %v468
        %s471 = scalar_lea.vmem %s2, 32
        %v472 = vld [vmem:[%s471] sm:$0xf]
        %473 = vrot.lane.b32.xlu0 %v223, 111
        %v474 = vpop.permute.xlu0 %473
        %475 = vrot.lane.b32.xlu0 %v241, 111
        %v476 = vpop.permute.xlu0 %475
        %vm477 = vcmp.lt.s32.totalorder %v248, 111
        %v478 = vsel %vm477, %v474, %v476
        %v479 = vsel %vm477, %v476, %v474
        %v481 = vlaneseq
        %v482 = vshrl.u32 %v481, 7
        %v483 = vsub.s32 0, %v482
        %v484 = vrot.slane %v238, %v483
        %v485 = vlaneseq
        %v486 = vshrl.u32 %v485, 7
        %v487 = vsub.s32 1, %v486
        %v488 = vrot.slane %v238, %v487
        %v491 = vmul.f32 %v478, %v484
        %v492 = vmul.f32 %v479, %v488
        %494 = vset.pattern.permute.xlu0 0
        %495 = vperm.xlu0 %494, %v472
        %v496 = vpop.permute.xlu0 %495
        %v498 = vmul.f32 %v496, %v491
        %v499 = vmul.f32 %v496, %v492
        %v500 = vadd.f32 %v469, %v498
        %v501 = vadd.f32 %v470, %v499
        %vm502 = vcmask 1043456
        %v503 = vsel %vm502, %v500, 0.0
        %v504 = vsel %vm502, %v501, 0.0
        %v505 = vadd.f32 %v503, %v504
        %506 = vadd.xlane.f32.xlu0 %v505
        %v507 = vpop.xlane.xlu0 %506
        %v508 = vmul.f32 %v500, %v500
        %v509 = vmul.f32 %v501, %v501
        %v510 = vsel %vm502, %v508, 0.0
        %v511 = vsel %vm502, %v509, 0.0
        %v512 = vadd.f32 %v510, %v511
        %513 = vadd.xlane.f32.xlu0 %v512
        %v514 = vpop.xlane.xlu0 %513
        %v515 = vmul.f32 %v507, 0.00390625
        %v516 = vmul.f32 %v514, 0.00390625
        %v517 = vmul.f32 %v515, %v515
        %v518 = vsub.f32 %v516, %v517
        %v519 = vmax.f32 %v518, 0.0
        %v520 = vsub.f32 %v500, %v515
        %v521 = vsub.f32 %v501, %v515
        %v522 = vadd.f32 %v519, 1e-05
        %v523 = vrsqrt.pop %v522
        %v524 = vmul.f32 %v520, %v523
        %v525 = vmul.f32 %v521, %v523
        %vm526 = vcmp.ge.f32.partialorder %v524, 0.0
        %vm527 = vcmp.ge.f32.partialorder %v525, 0.0
        %v528 = vmul.f32 %v524, 0.2
        %v529 = vmul.f32 %v525, 0.2
        %v530 = vsel %vm526, %v524, %v528
        %v531 = vsel %vm527, %v525, %v529
        %532 = vrot.lane.b32.xlu0 %v530, 17
        %v533 = vpop.permute.xlu0 %532
        %534 = vrot.lane.b32.xlu0 %v531, 17
        %v535 = vpop.permute.xlu0 %534
        %v536 = vsel %vm249, %v533, %v535
        %v537 = vsel %vm249, %v535, %v533
        %v538 = vmul.f32 %v537, %v256
        %v539 = vmul.f32 %v536, %v260
        %v540 = vld [vmem:[%s3] sm:$0xff]
        %542 = vset.pattern.permute.xlu0 0
        %543 = vperm.xlu0 %542, %v540
        %v544 = vpop.permute.xlu0 %543
        %v546 = vlaneseq
        %v547 = vshrl.u32 %v546, 7
        %v548 = vsub.s32 0, %v547
        %v549 = vrot.slane %v538, %v548
        %v550 = vlaneseq
        %v551 = vshrl.u32 %v550, 7
        %v552 = vsub.s32 0, %v551
        %v553 = vrot.slane %v539, %v552
        %v554 = vmul.f32 %v544, %v549
        %v555 = vmul.f32 %v544, %v553
        %v556 = vadd.f32 %v554, 0.0
        %v557 = vadd.f32 %v555, 0.0
        %558 = vset.pattern.permute.xlu0 1
        %559 = vperm.xlu0 %558, %v540
        %v560 = vpop.permute.xlu0 %559
        %v562 = vlaneseq
        %v563 = vshrl.u32 %v562, 7
        %v564 = vsub.s32 1, %v563
        %v565 = vrot.slane %v538, %v564
        %v566 = vlaneseq
        %v567 = vshrl.u32 %v566, 7
        %v568 = vsub.s32 1, %v567
        %v569 = vrot.slane %v539, %v568
        %v570 = vmul.f32 %v560, %v565
        %v571 = vmul.f32 %v560, %v569
        %v572 = vadd.f32 %v556, %v570
        %v573 = vadd.f32 %v557, %v571
        %574 = vset.pattern.permute.xlu0 2
        %575 = vperm.xlu0 %574, %v540
        %v576 = vpop.permute.xlu0 %575
        %v578 = vlaneseq
        %v579 = vshrl.u32 %v578, 7
        %v580 = vsub.s32 2, %v579
        %v581 = vrot.slane %v538, %v580
        %v582 = vlaneseq
        %v583 = vshrl.u32 %v582, 7
        %v584 = vsub.s32 2, %v583
        %v585 = vrot.slane %v539, %v584
        %v586 = vmul.f32 %v576, %v581
        %v587 = vmul.f32 %v576, %v585
        %v588 = vadd.f32 %v572, %v586
        %v589 = vadd.f32 %v573, %v587
        %590 = vset.pattern.permute.xlu0 3
        %591 = vperm.xlu0 %590, %v540
        %v592 = vpop.permute.xlu0 %591
        %v594 = vlaneseq
        %v595 = vshrl.u32 %v594, 7
        %v596 = vsub.s32 3, %v595
        %v597 = vrot.slane %v538, %v596
        %v598 = vlaneseq
        %v599 = vshrl.u32 %v598, 7
        %v600 = vsub.s32 3, %v599
        %v601 = vrot.slane %v539, %v600
        %v602 = vmul.f32 %v592, %v597
        %v603 = vmul.f32 %v592, %v601
        %v604 = vadd.f32 %v588, %v602
        %v605 = vadd.f32 %v589, %v603
        %606 = vrot.lane.b32.xlu0 %v530, 16
        %v607 = vpop.permute.xlu0 %606
        %608 = vrot.lane.b32.xlu0 %v531, 16
        %v609 = vpop.permute.xlu0 %608
        %v610 = vsel %vm280, %v607, %v609
        %v611 = vsel %vm280, %v609, %v607
        %v612 = vmul.f32 %v611, %v287
        %v613 = vmul.f32 %v610, %v291
        %s614 = scalar_lea.vmem %s3, 8
        %v615 = vld [vmem:[%s614] sm:$0xff]
        %617 = vset.pattern.permute.xlu0 0
        %618 = vperm.xlu0 %617, %v615
        %v619 = vpop.permute.xlu0 %618
        %v621 = vlaneseq
        %v622 = vshrl.u32 %v621, 7
        %v623 = vsub.s32 0, %v622
        %v624 = vrot.slane %v612, %v623
        %v625 = vlaneseq
        %v626 = vshrl.u32 %v625, 7
        %v627 = vsub.s32 0, %v626
        %v628 = vrot.slane %v613, %v627
        %v629 = vmul.f32 %v619, %v624
        %v630 = vmul.f32 %v619, %v628
        %v631 = vadd.f32 %v604, %v629
        %v632 = vadd.f32 %v605, %v630
        %633 = vset.pattern.permute.xlu0 1
        %634 = vperm.xlu0 %633, %v615
        %v635 = vpop.permute.xlu0 %634
        %v637 = vlaneseq
        %v638 = vshrl.u32 %v637, 7
        %v639 = vsub.s32 1, %v638
        %v640 = vrot.slane %v612, %v639
        %v641 = vlaneseq
        %v642 = vshrl.u32 %v641, 7
        %v643 = vsub.s32 1, %v642
        %v644 = vrot.slane %v613, %v643
        %v645 = vmul.f32 %v635, %v640
        %v646 = vmul.f32 %v635, %v644
        %v647 = vadd.f32 %v631, %v645
        %v648 = vadd.f32 %v632, %v646
        %649 = vset.pattern.permute.xlu0 2
        %650 = vperm.xlu0 %649, %v615
        %v651 = vpop.permute.xlu0 %650
        %v653 = vlaneseq
        %v654 = vshrl.u32 %v653, 7
        %v655 = vsub.s32 2, %v654
        %v656 = vrot.slane %v612, %v655
        %v657 = vlaneseq
        %v658 = vshrl.u32 %v657, 7
        %v659 = vsub.s32 2, %v658
        %v660 = vrot.slane %v613, %v659
        %v661 = vmul.f32 %v651, %v656
        %v662 = vmul.f32 %v651, %v660
        %v663 = vadd.f32 %v647, %v661
        %v664 = vadd.f32 %v648, %v662
        %665 = vset.pattern.permute.xlu0 3
        %666 = vperm.xlu0 %665, %v615
        %v667 = vpop.permute.xlu0 %666
        %v669 = vlaneseq
        %v670 = vshrl.u32 %v669, 7
        %v671 = vsub.s32 3, %v670
        %v672 = vrot.slane %v612, %v671
        %v673 = vlaneseq
        %v674 = vshrl.u32 %v673, 7
        %v675 = vsub.s32 3, %v674
        %v676 = vrot.slane %v613, %v675
        %v677 = vmul.f32 %v667, %v672
        %v678 = vmul.f32 %v667, %v676
        %v679 = vadd.f32 %v663, %v677
        %v680 = vadd.f32 %v664, %v678
        %681 = vrot.lane.b32.xlu0 %v530, 15
        %v682 = vpop.permute.xlu0 %681
        %683 = vrot.lane.b32.xlu0 %v531, 15
        %v684 = vpop.permute.xlu0 %683
        %v685 = vsel %vm311, %v682, %v684
        %v686 = vsel %vm311, %v684, %v682
        %v687 = vmul.f32 %v686, %v318
        %v688 = vmul.f32 %v685, %v322
        %s689 = scalar_lea.vmem %s3, 16
        %v690 = vld [vmem:[%s689] sm:$0xff]
        %692 = vset.pattern.permute.xlu0 0
        %693 = vperm.xlu0 %692, %v690
        %v694 = vpop.permute.xlu0 %693
        %v696 = vlaneseq
        %v697 = vshrl.u32 %v696, 7
        %v698 = vsub.s32 0, %v697
        %v699 = vrot.slane %v687, %v698
        %v700 = vlaneseq
        %v701 = vshrl.u32 %v700, 7
        %v702 = vsub.s32 0, %v701
        %v703 = vrot.slane %v688, %v702
        %v704 = vmul.f32 %v694, %v699
        %v705 = vmul.f32 %v694, %v703
        %v706 = vadd.f32 %v679, %v704
        %v707 = vadd.f32 %v680, %v705
        %708 = vset.pattern.permute.xlu0 1
        %709 = vperm.xlu0 %708, %v690
        %v710 = vpop.permute.xlu0 %709
        %v712 = vlaneseq
        %v713 = vshrl.u32 %v712, 7
        %v714 = vsub.s32 1, %v713
        %v715 = vrot.slane %v687, %v714
        %v716 = vlaneseq
        %v717 = vshrl.u32 %v716, 7
        %v718 = vsub.s32 1, %v717
        %v719 = vrot.slane %v688, %v718
        %v720 = vmul.f32 %v710, %v715
        %v721 = vmul.f32 %v710, %v719
        %v722 = vadd.f32 %v706, %v720
        %v723 = vadd.f32 %v707, %v721
        %724 = vset.pattern.permute.xlu0 2
        %725 = vperm.xlu0 %724, %v690
        %v726 = vpop.permute.xlu0 %725
        %v728 = vlaneseq
        %v729 = vshrl.u32 %v728, 7
        %v730 = vsub.s32 2, %v729
        %v731 = vrot.slane %v687, %v730
        %v732 = vlaneseq
        %v733 = vshrl.u32 %v732, 7
        %v734 = vsub.s32 2, %v733
        %v735 = vrot.slane %v688, %v734
        %v736 = vmul.f32 %v726, %v731
        %v737 = vmul.f32 %v726, %v735
        %v738 = vadd.f32 %v722, %v736
        %v739 = vadd.f32 %v723, %v737
        %740 = vset.pattern.permute.xlu0 3
        %741 = vperm.xlu0 %740, %v690
        %v742 = vpop.permute.xlu0 %741
        %v744 = vlaneseq
        %v745 = vshrl.u32 %v744, 7
        %v746 = vsub.s32 3, %v745
        %v747 = vrot.slane %v687, %v746
        %v748 = vlaneseq
        %v749 = vshrl.u32 %v748, 7
        %v750 = vsub.s32 3, %v749
        %v751 = vrot.slane %v688, %v750
        %v752 = vmul.f32 %v742, %v747
        %v753 = vmul.f32 %v742, %v751
        %v754 = vadd.f32 %v738, %v752
        %v755 = vadd.f32 %v739, %v753
        %756 = vrot.lane.b32.xlu0 %v530, 1
        %v757 = vpop.permute.xlu0 %756
        %758 = vrot.lane.b32.xlu0 %v531, 1
        %v759 = vpop.permute.xlu0 %758
        %v760 = vsel %vm342, %v757, %v759
        %v761 = vsel %vm342, %v759, %v757
        %v762 = vmul.f32 %v761, %v349
        %v763 = vmul.f32 %v760, %v353
        %s764 = scalar_lea.vmem %s3, 24
        %v765 = vld [vmem:[%s764] sm:$0xff]
        %767 = vset.pattern.permute.xlu0 0
        %768 = vperm.xlu0 %767, %v765
        %v769 = vpop.permute.xlu0 %768
        %v771 = vlaneseq
        %v772 = vshrl.u32 %v771, 7
        %v773 = vsub.s32 0, %v772
        %v774 = vrot.slane %v762, %v773
        %v775 = vlaneseq
        %v776 = vshrl.u32 %v775, 7
        %v777 = vsub.s32 0, %v776
        %v778 = vrot.slane %v763, %v777
        %v779 = vmul.f32 %v769, %v774
        %v780 = vmul.f32 %v769, %v778
        %v781 = vadd.f32 %v754, %v779
        %v782 = vadd.f32 %v755, %v780
        %783 = vset.pattern.permute.xlu0 1
        %784 = vperm.xlu0 %783, %v765
        %v785 = vpop.permute.xlu0 %784
        %v787 = vlaneseq
        %v788 = vshrl.u32 %v787, 7
        %v789 = vsub.s32 1, %v788
        %v790 = vrot.slane %v762, %v789
        %v791 = vlaneseq
        %v792 = vshrl.u32 %v791, 7
        %v793 = vsub.s32 1, %v792
        %v794 = vrot.slane %v763, %v793
        %v795 = vmul.f32 %v785, %v790
        %v796 = vmul.f32 %v785, %v794
        %v797 = vadd.f32 %v781, %v795
        %v798 = vadd.f32 %v782, %v796
        %799 = vset.pattern.permute.xlu0 2
        %800 = vperm.xlu0 %799, %v765
        %v801 = vpop.permute.xlu0 %800
        %v803 = vlaneseq
        %v804 = vshrl.u32 %v803, 7
        %v805 = vsub.s32 2, %v804
        %v806 = vrot.slane %v762, %v805
        %v807 = vlaneseq
        %v808 = vshrl.u32 %v807, 7
        %v809 = vsub.s32 2, %v808
        %v810 = vrot.slane %v763, %v809
        %v811 = vmul.f32 %v801, %v806
        %v812 = vmul.f32 %v801, %v810
        %v813 = vadd.f32 %v797, %v811
        %v814 = vadd.f32 %v798, %v812
        %815 = vset.pattern.permute.xlu0 3
        %816 = vperm.xlu0 %815, %v765
        %v817 = vpop.permute.xlu0 %816
        %v819 = vlaneseq
        %v820 = vshrl.u32 %v819, 7
        %v821 = vsub.s32 3, %v820
        %v822 = vrot.slane %v762, %v821
        %v823 = vlaneseq
        %v824 = vshrl.u32 %v823, 7
        %v825 = vsub.s32 3, %v824
        %v826 = vrot.slane %v763, %v825
        %v827 = vmul.f32 %v817, %v822
        %v828 = vmul.f32 %v817, %v826
        %v829 = vadd.f32 %v813, %v827
        %v830 = vadd.f32 %v814, %v828
        %s831 = scalar_lea.vmem %s3, 32
        %v832 = vld [vmem:[%s831] sm:$0xff]
        %834 = vset.pattern.permute.xlu0 0
        %835 = vperm.xlu0 %834, %v832
        %v836 = vpop.permute.xlu0 %835
        %v838 = vlaneseq
        %v839 = vshrl.u32 %v838, 7
        %v840 = vsub.s32 0, %v839
        %v841 = vrot.slane %v530, %v840
        %v842 = vlaneseq
        %v843 = vshrl.u32 %v842, 7
        %v844 = vsub.s32 0, %v843
        %v845 = vrot.slane %v531, %v844
        %v846 = vmul.f32 %v836, %v841
        %v847 = vmul.f32 %v836, %v845
        %v848 = vadd.f32 %v829, %v846
        %v849 = vadd.f32 %v830, %v847
        %850 = vset.pattern.permute.xlu0 1
        %851 = vperm.xlu0 %850, %v832
        %v852 = vpop.permute.xlu0 %851
        %v854 = vlaneseq
        %v855 = vshrl.u32 %v854, 7
        %v856 = vsub.s32 1, %v855
        %v857 = vrot.slane %v530, %v856
        %v858 = vlaneseq
        %v859 = vshrl.u32 %v858, 7
        %v860 = vsub.s32 1, %v859
        %v861 = vrot.slane %v531, %v860
        %v862 = vmul.f32 %v852, %v857
        %v863 = vmul.f32 %v852, %v861
        %v864 = vadd.f32 %v848, %v862
        %v865 = vadd.f32 %v849, %v863
        %866 = vset.pattern.permute.xlu0 2
        %867 = vperm.xlu0 %866, %v832
        %v868 = vpop.permute.xlu0 %867
        %v870 = vlaneseq
        %v871 = vshrl.u32 %v870, 7
        %v872 = vsub.s32 2, %v871
        %v873 = vrot.slane %v530, %v872
        %v874 = vlaneseq
        %v875 = vshrl.u32 %v874, 7
        %v876 = vsub.s32 2, %v875
        %v877 = vrot.slane %v531, %v876
        %v878 = vmul.f32 %v868, %v873
        %v879 = vmul.f32 %v868, %v877
        %v880 = vadd.f32 %v864, %v878
        %v881 = vadd.f32 %v865, %v879
        %882 = vset.pattern.permute.xlu0 3
        %883 = vperm.xlu0 %882, %v832
        %v884 = vpop.permute.xlu0 %883
        %v886 = vlaneseq
        %v887 = vshrl.u32 %v886, 7
        %v888 = vsub.s32 3, %v887
        %v889 = vrot.slane %v530, %v888
        %v890 = vlaneseq
        %v891 = vshrl.u32 %v890, 7
        %v892 = vsub.s32 3, %v891
        %v893 = vrot.slane %v531, %v892
        %v894 = vmul.f32 %v884, %v889
        %v895 = vmul.f32 %v884, %v893
        %v896 = vadd.f32 %v880, %v894
        %v897 = vadd.f32 %v881, %v895
        %898 = vrot.lane.b32.xlu0 %v530, 127
        %v899 = vpop.permute.xlu0 %898
        %900 = vrot.lane.b32.xlu0 %v531, 127
        %v901 = vpop.permute.xlu0 %900
        %v902 = vsel %vm384, %v899, %v901
        %v903 = vsel %vm384, %v901, %v899
        %v904 = vmul.f32 %v902, %v391
        %v905 = vmul.f32 %v903, %v395
        %s906 = scalar_lea.vmem %s3, 40
        %v907 = vld [vmem:[%s906] sm:$0xff]
        %909 = vset.pattern.permute.xlu0 0
        %910 = vperm.xlu0 %909, %v907
        %v911 = vpop.permute.xlu0 %910
        %v913 = vlaneseq
        %v914 = vshrl.u32 %v913, 7
        %v915 = vsub.s32 0, %v914
        %v916 = vrot.slane %v904, %v915
        %v917 = vlaneseq
        %v918 = vshrl.u32 %v917, 7
        %v919 = vsub.s32 0, %v918
        %v920 = vrot.slane %v905, %v919
        %v921 = vmul.f32 %v911, %v916
        %v922 = vmul.f32 %v911, %v920
        %v923 = vadd.f32 %v896, %v921
        %v924 = vadd.f32 %v897, %v922
        %925 = vset.pattern.permute.xlu0 1
        %926 = vperm.xlu0 %925, %v907
        %v927 = vpop.permute.xlu0 %926
        %v929 = vlaneseq
        %v930 = vshrl.u32 %v929, 7
        %v931 = vsub.s32 1, %v930
        %v932 = vrot.slane %v904, %v931
        %v933 = vlaneseq
        %v934 = vshrl.u32 %v933, 7
        %v935 = vsub.s32 1, %v934
        %v936 = vrot.slane %v905, %v935
        %v937 = vmul.f32 %v927, %v932
        %v938 = vmul.f32 %v927, %v936
        %v939 = vadd.f32 %v923, %v937
        %v940 = vadd.f32 %v924, %v938
        %941 = vset.pattern.permute.xlu0 2
        %942 = vperm.xlu0 %941, %v907
        %v943 = vpop.permute.xlu0 %942
        %v945 = vlaneseq
        %v946 = vshrl.u32 %v945, 7
        %v947 = vsub.s32 2, %v946
        %v948 = vrot.slane %v904, %v947
        %v949 = vlaneseq
        %v950 = vshrl.u32 %v949, 7
        %v951 = vsub.s32 2, %v950
        %v952 = vrot.slane %v905, %v951
        %v953 = vmul.f32 %v943, %v948
        %v954 = vmul.f32 %v943, %v952
        %v955 = vadd.f32 %v939, %v953
        %v956 = vadd.f32 %v940, %v954
        %957 = vset.pattern.permute.xlu0 3
        %958 = vperm.xlu0 %957, %v907
        %v959 = vpop.permute.xlu0 %958
        %v961 = vlaneseq
        %v962 = vshrl.u32 %v961, 7
        %v963 = vsub.s32 3, %v962
        %v964 = vrot.slane %v904, %v963
        %v965 = vlaneseq
        %v966 = vshrl.u32 %v965, 7
        %v967 = vsub.s32 3, %v966
        %v968 = vrot.slane %v905, %v967
        %v969 = vmul.f32 %v959, %v964
        %v970 = vmul.f32 %v959, %v968
        %v971 = vadd.f32 %v955, %v969
        %v972 = vadd.f32 %v956, %v970
        %973 = vrot.lane.b32.xlu0 %v530, 113
        %v974 = vpop.permute.xlu0 %973
        %975 = vrot.lane.b32.xlu0 %v531, 113
        %v976 = vpop.permute.xlu0 %975
        %v977 = vsel %vm415, %v974, %v976
        %v978 = vsel %vm415, %v976, %v974
        %v979 = vmul.f32 %v977, %v422
        %v980 = vmul.f32 %v978, %v426
        %s981 = scalar_lea.vmem %s3, 48
        %v982 = vld [vmem:[%s981] sm:$0xff]
        %984 = vset.pattern.permute.xlu0 0
        %985 = vperm.xlu0 %984, %v982
        %v986 = vpop.permute.xlu0 %985
        %v988 = vlaneseq
        %v989 = vshrl.u32 %v988, 7
        %v990 = vsub.s32 0, %v989
        %v991 = vrot.slane %v979, %v990
        %v992 = vlaneseq
        %v993 = vshrl.u32 %v992, 7
        %v994 = vsub.s32 0, %v993
        %v995 = vrot.slane %v980, %v994
        %v996 = vmul.f32 %v986, %v991
        %v997 = vmul.f32 %v986, %v995
        %v998 = vadd.f32 %v971, %v996
        %v999 = vadd.f32 %v972, %v997
        %1000 = vset.pattern.permute.xlu0 1
        %1001 = vperm.xlu0 %1000, %v982
        %v1002 = vpop.permute.xlu0 %1001
        %v1004 = vlaneseq
        %v1005 = vshrl.u32 %v1004, 7
        %v1006 = vsub.s32 1, %v1005
        %v1007 = vrot.slane %v979, %v1006
        %v1008 = vlaneseq
        %v1009 = vshrl.u32 %v1008, 7
        %v1010 = vsub.s32 1, %v1009
        %v1011 = vrot.slane %v980, %v1010
        %v1012 = vmul.f32 %v1002, %v1007
        %v1013 = vmul.f32 %v1002, %v1011
        %v1014 = vadd.f32 %v998, %v1012
        %v1015 = vadd.f32 %v999, %v1013
        %1016 = vset.pattern.permute.xlu0 2
        %1017 = vperm.xlu0 %1016, %v982
        %v1018 = vpop.permute.xlu0 %1017
        %v1020 = vlaneseq
        %v1021 = vshrl.u32 %v1020, 7
        %v1022 = vsub.s32 2, %v1021
        %v1023 = vrot.slane %v979, %v1022
        %v1024 = vlaneseq
        %v1025 = vshrl.u32 %v1024, 7
        %v1026 = vsub.s32 2, %v1025
        %v1027 = vrot.slane %v980, %v1026
        %v1028 = vmul.f32 %v1018, %v1023
        %v1029 = vmul.f32 %v1018, %v1027
        %v1030 = vadd.f32 %v1014, %v1028
        %v1031 = vadd.f32 %v1015, %v1029
        %1032 = vset.pattern.permute.xlu0 3
        %1033 = vperm.xlu0 %1032, %v982
        %v1034 = vpop.permute.xlu0 %1033
        %v1036 = vlaneseq
        %v1037 = vshrl.u32 %v1036, 7
        %v1038 = vsub.s32 3, %v1037
        %v1039 = vrot.slane %v979, %v1038
        %v1040 = vlaneseq
        %v1041 = vshrl.u32 %v1040, 7
        %v1042 = vsub.s32 3, %v1041
        %v1043 = vrot.slane %v980, %v1042
        %v1044 = vmul.f32 %v1034, %v1039
        %v1045 = vmul.f32 %v1034, %v1043
        %v1046 = vadd.f32 %v1030, %v1044
        %v1047 = vadd.f32 %v1031, %v1045
        %1048 = vrot.lane.b32.xlu0 %v530, 112
        %v1049 = vpop.permute.xlu0 %1048
        %1050 = vrot.lane.b32.xlu0 %v531, 112
        %v1051 = vpop.permute.xlu0 %1050
        %v1052 = vsel %vm446, %v1049, %v1051
        %v1053 = vsel %vm446, %v1051, %v1049
        %v1054 = vmul.f32 %v1052, %v453
        %v1055 = vmul.f32 %v1053, %v457
        %s1056 = scalar_lea.vmem %s3, 56
        %v1057 = vld [vmem:[%s1056] sm:$0xff]
        %1059 = vset.pattern.permute.xlu0 0
        %1060 = vperm.xlu0 %1059, %v1057
        %v1061 = vpop.permute.xlu0 %1060
        %v1063 = vlaneseq
        %v1064 = vshrl.u32 %v1063, 7
        %v1065 = vsub.s32 0, %v1064
        %v1066 = vrot.slane %v1054, %v1065
        %v1067 = vlaneseq
        %v1068 = vshrl.u32 %v1067, 7
        %v1069 = vsub.s32 0, %v1068
        %v1070 = vrot.slane %v1055, %v1069
        %v1071 = vmul.f32 %v1061, %v1066
        %v1072 = vmul.f32 %v1061, %v1070
        %v1073 = vadd.f32 %v1046, %v1071
        %v1074 = vadd.f32 %v1047, %v1072
        %1075 = vset.pattern.permute.xlu0 1
        %1076 = vperm.xlu0 %1075, %v1057
        %v1077 = vpop.permute.xlu0 %1076
        %v1079 = vlaneseq
        %v1080 = vshrl.u32 %v1079, 7
        %v1081 = vsub.s32 1, %v1080
        %v1082 = vrot.slane %v1054, %v1081
        %v1083 = vlaneseq
        %v1084 = vshrl.u32 %v1083, 7
        %v1085 = vsub.s32 1, %v1084
        %v1086 = vrot.slane %v1055, %v1085
        %v1087 = vmul.f32 %v1077, %v1082
        %v1088 = vmul.f32 %v1077, %v1086
        %v1089 = vadd.f32 %v1073, %v1087
        %v1090 = vadd.f32 %v1074, %v1088
        %1091 = vset.pattern.permute.xlu0 2
        %1092 = vperm.xlu0 %1091, %v1057
        %v1093 = vpop.permute.xlu0 %1092
        %v1095 = vlaneseq
        %v1096 = vshrl.u32 %v1095, 7
        %v1097 = vsub.s32 2, %v1096
        %v1098 = vrot.slane %v1054, %v1097
        %v1099 = vlaneseq
        %v1100 = vshrl.u32 %v1099, 7
        %v1101 = vsub.s32 2, %v1100
        %v1102 = vrot.slane %v1055, %v1101
        %v1103 = vmul.f32 %v1093, %v1098
        %v1104 = vmul.f32 %v1093, %v1102
        %v1105 = vadd.f32 %v1089, %v1103
        %v1106 = vadd.f32 %v1090, %v1104
        %1107 = vset.pattern.permute.xlu0 3
        %1108 = vperm.xlu0 %1107, %v1057
        %v1109 = vpop.permute.xlu0 %1108
        %v1111 = vlaneseq
        %v1112 = vshrl.u32 %v1111, 7
        %v1113 = vsub.s32 3, %v1112
        %v1114 = vrot.slane %v1054, %v1113
        %v1115 = vlaneseq
        %v1116 = vshrl.u32 %v1115, 7
        %v1117 = vsub.s32 3, %v1116
        %v1118 = vrot.slane %v1055, %v1117
        %v1119 = vmul.f32 %v1109, %v1114
        %v1120 = vmul.f32 %v1109, %v1118
        %v1121 = vadd.f32 %v1105, %v1119
        %v1122 = vadd.f32 %v1106, %v1120
        %1123 = vrot.lane.b32.xlu0 %v530, 111
        %v1124 = vpop.permute.xlu0 %1123
        %1125 = vrot.lane.b32.xlu0 %v531, 111
        %v1126 = vpop.permute.xlu0 %1125
        %v1127 = vsel %vm477, %v1124, %v1126
        %v1128 = vsel %vm477, %v1126, %v1124
        %v1129 = vmul.f32 %v1127, %v484
        %v1130 = vmul.f32 %v1128, %v488
        %s1131 = scalar_lea.vmem %s3, 64
        %v1132 = vld [vmem:[%s1131] sm:$0xff]
        %1134 = vset.pattern.permute.xlu0 0
        %1135 = vperm.xlu0 %1134, %v1132
        %v1136 = vpop.permute.xlu0 %1135
        %v1138 = vlaneseq
        %v1139 = vshrl.u32 %v1138, 7
        %v1140 = vsub.s32 0, %v1139
        %v1141 = vrot.slane %v1129, %v1140
        %v1142 = vlaneseq
        %v1143 = vshrl.u32 %v1142, 7
        %v1144 = vsub.s32 0, %v1143
        %v1145 = vrot.slane %v1130, %v1144
        %v1146 = vmul.f32 %v1136, %v1141
        %v1147 = vmul.f32 %v1136, %v1145
        %v1148 = vadd.f32 %v1121, %v1146
        %v1149 = vadd.f32 %v1122, %v1147
        %1150 = vset.pattern.permute.xlu0 1
        %1151 = vperm.xlu0 %1150, %v1132
        %v1152 = vpop.permute.xlu0 %1151
        %v1154 = vlaneseq
        %v1155 = vshrl.u32 %v1154, 7
        %v1156 = vsub.s32 1, %v1155
        %v1157 = vrot.slane %v1129, %v1156
        %v1158 = vlaneseq
        %v1159 = vshrl.u32 %v1158, 7
        %v1160 = vsub.s32 1, %v1159
        %v1161 = vrot.slane %v1130, %v1160
        %v1162 = vmul.f32 %v1152, %v1157
        %v1163 = vmul.f32 %v1152, %v1161
        %v1164 = vadd.f32 %v1148, %v1162
        %v1165 = vadd.f32 %v1149, %v1163
        %1166 = vset.pattern.permute.xlu0 2
        %1167 = vperm.xlu0 %1166, %v1132
        %v1168 = vpop.permute.xlu0 %1167
        %v1170 = vlaneseq
        %v1171 = vshrl.u32 %v1170, 7
        %v1172 = vsub.s32 2, %v1171
        %v1173 = vrot.slane %v1129, %v1172
        %v1174 = vlaneseq
        %v1175 = vshrl.u32 %v1174, 7
        %v1176 = vsub.s32 2, %v1175
        %v1177 = vrot.slane %v1130, %v1176
        %v1178 = vmul.f32 %v1168, %v1173
        %v1179 = vmul.f32 %v1168, %v1177
        %v1180 = vadd.f32 %v1164, %v1178
        %v1181 = vadd.f32 %v1165, %v1179
        %1182 = vset.pattern.permute.xlu0 3
        %1183 = vperm.xlu0 %1182, %v1132
        %v1184 = vpop.permute.xlu0 %1183
        %v1186 = vlaneseq
        %v1187 = vshrl.u32 %v1186, 7
        %v1188 = vsub.s32 3, %v1187
        %v1189 = vrot.slane %v1129, %v1188
        %v1190 = vlaneseq
        %v1191 = vshrl.u32 %v1190, 7
        %v1192 = vsub.s32 3, %v1191
        %v1193 = vrot.slane %v1130, %v1192
        %v1194 = vmul.f32 %v1184, %v1189
        %v1195 = vmul.f32 %v1184, %v1193
        %v1196 = vadd.f32 %v1180, %v1194
        %v1197 = vadd.f32 %v1181, %v1195
        %v1198 = vld [vmem:[%s4] sm:$0xff]
        %1200 = vset.pattern.permute.xlu0 0
        %1201 = vperm.xlu0 %1200, %v1198
        %v1202 = vpop.permute.xlu0 %1201
        %v1204 = vlaneseq
        %v1205 = vshrl.u32 %v1204, 7
        %v1206 = vsub.s32 0, %v1205
        %v1207 = vrot.slane %v223, %v1206
        %v1208 = vlaneseq
        %v1209 = vshrl.u32 %v1208, 7
        %v1210 = vsub.s32 4, %v1209
        %v1211 = vrot.slane %v223, %v1210
        %v1214 = vlaneseq
        %v1215 = vshrl.u32 %v1214, 7
        %v1216 = vsub.s32 0, %v1215
        %v1217 = vrot.slane %v1207, %v1216
        %v1218 = vlaneseq
        %v1219 = vshrl.u32 %v1218, 7
        %v1220 = vsub.s32 0, %v1219
        %v1221 = vrot.slane %v1211, %v1220
        %v1222 = vmul.f32 %v1202, %v1217
        %v1223 = vmul.f32 %v1202, %v1221
        %v1224 = vadd.f32 %v1222, 0.0
        %v1225 = vadd.f32 %v1223, 0.0
        %1226 = vset.pattern.permute.xlu0 1
        %1227 = vperm.xlu0 %1226, %v1198
        %v1228 = vpop.permute.xlu0 %1227
        %v1230 = vlaneseq
        %v1231 = vshrl.u32 %v1230, 7
        %v1232 = vsub.s32 1, %v1231
        %v1233 = vrot.slane %v223, %v1232
        %v1234 = vlaneseq
        %v1235 = vshrl.u32 %v1234, 7
        %v1236 = vsub.s32 5, %v1235
        %v1237 = vrot.slane %v223, %v1236
        %v1240 = vlaneseq
        %v1241 = vshrl.u32 %v1240, 7
        %v1242 = vsub.s32 1, %v1241
        %v1243 = vrot.slane %v1233, %v1242
        %v1244 = vlaneseq
        %v1245 = vshrl.u32 %v1244, 7
        %v1246 = vsub.s32 1, %v1245
        %v1247 = vrot.slane %v1237, %v1246
        %v1248 = vmul.f32 %v1228, %v1243
        %v1249 = vmul.f32 %v1228, %v1247
        %v1250 = vadd.f32 %v1224, %v1248
        %v1251 = vadd.f32 %v1225, %v1249
        %1252 = vset.pattern.permute.xlu0 2
        %1253 = vperm.xlu0 %1252, %v1198
        %v1254 = vpop.permute.xlu0 %1253
        %v1256 = vlaneseq
        %v1257 = vshrl.u32 %v1256, 7
        %v1258 = vsub.s32 2, %v1257
        %v1259 = vrot.slane %v223, %v1258
        %v1260 = vlaneseq
        %v1261 = vshrl.u32 %v1260, 7
        %v1262 = vsub.s32 6, %v1261
        %v1263 = vrot.slane %v223, %v1262
        %v1266 = vlaneseq
        %v1267 = vshrl.u32 %v1266, 7
        %v1268 = vsub.s32 2, %v1267
        %v1269 = vrot.slane %v1259, %v1268
        %v1270 = vlaneseq
        %v1271 = vshrl.u32 %v1270, 7
        %v1272 = vsub.s32 2, %v1271
        %v1273 = vrot.slane %v1263, %v1272
        %v1274 = vmul.f32 %v1254, %v1269
        %v1275 = vmul.f32 %v1254, %v1273
        %v1276 = vadd.f32 %v1250, %v1274
        %v1277 = vadd.f32 %v1251, %v1275
        %1278 = vset.pattern.permute.xlu0 3
        %1279 = vperm.xlu0 %1278, %v1198
        %v1280 = vpop.permute.xlu0 %1279
        %v1282 = vlaneseq
        %v1283 = vshrl.u32 %v1282, 7
        %v1284 = vsub.s32 3, %v1283
        %v1285 = vrot.slane %v223, %v1284
        %v1286 = vlaneseq
        %v1287 = vshrl.u32 %v1286, 7
        %v1288 = vsub.s32 7, %v1287
        %v1289 = vrot.slane %v223, %v1288
        %v1292 = vlaneseq
        %v1293 = vshrl.u32 %v1292, 7
        %v1294 = vsub.s32 3, %v1293
        %v1295 = vrot.slane %v1285, %v1294
        %v1296 = vlaneseq
        %v1297 = vshrl.u32 %v1296, 7
        %v1298 = vsub.s32 3, %v1297
        %v1299 = vrot.slane %v1289, %v1298
        %v1300 = vmul.f32 %v1280, %v1295
        %v1301 = vmul.f32 %v1280, %v1299
        %v1302 = vadd.f32 %v1276, %v1300
        %v1303 = vadd.f32 %v1277, %v1301
        %v1304 = vadd.f32 %v1196, %v1197
        %1305 = vadd.xlane.f32.xlu0 %v1304
        %v1306 = vpop.xlane.xlu0 %1305
        %v1307 = vmul.f32 %v1196, %v1196
        %v1308 = vmul.f32 %v1197, %v1197
        %v1309 = vadd.f32 %v1307, %v1308
        %1310 = vadd.xlane.f32.xlu0 %v1309
        %v1311 = vpop.xlane.xlu0 %1310
        %v1312 = vmul.f32 %v1306, 0.00390625
        %v1313 = vmul.f32 %v1311, 0.00390625
        %v1314 = vmul.f32 %v1312, %v1312
        %v1315 = vsub.f32 %v1313, %v1314
        %v1316 = vmax.f32 %v1315, 0.0
        %v1317 = vsub.f32 %v1196, %v1312
        %v1318 = vsub.f32 %v1197, %v1312
        %v1319 = vadd.f32 %v1316, 1e-05
        %v1320 = vrsqrt.pop %v1319
        %v1321 = vmul.f32 %v1317, %v1320
        %v1322 = vmul.f32 %v1318, %v1320
        %v1323 = vadd.f32 %v1302, %v1303
        %1324 = vadd.xlane.f32.xlu0 %v1323
        %v1325 = vpop.xlane.xlu0 %1324
        %v1326 = vmul.f32 %v1302, %v1302
        %v1327 = vmul.f32 %v1303, %v1303
        %v1328 = vadd.f32 %v1326, %v1327
        %1329 = vadd.xlane.f32.xlu0 %v1328
        %v1330 = vpop.xlane.xlu0 %1329
        %v1331 = vmul.f32 %v1325, 0.00390625
        %v1332 = vmul.f32 %v1330, 0.00390625
        %v1333 = vmul.f32 %v1331, %v1331
        %v1334 = vsub.f32 %v1332, %v1333
        %v1335 = vmax.f32 %v1334, 0.0
        %v1336 = vsub.f32 %v1302, %v1331
        %v1337 = vsub.f32 %v1303, %v1331
        %v1338 = vadd.f32 %v1335, 1e-05
        %v1339 = vrsqrt.pop %v1338
        %v1340 = vmul.f32 %v1336, %v1339
        %v1341 = vmul.f32 %v1337, %v1339
        %v1342 = vadd.f32 %v1321, %v1340
        %v1343 = vadd.f32 %v1322, %v1341
        %vm1344 = vcmp.ge.f32.partialorder %v1342, 0.0
        %vm1345 = vcmp.ge.f32.partialorder %v1343, 0.0
        %v1346 = vmul.f32 %v1342, 0.2
        %v1347 = vmul.f32 %v1343, 0.2
        %v1348 = vsel %vm1344, %v1342, %v1346
        %v1349 = vsel %vm1345, %v1343, %v1347
        %1350 = vst [vmem:[%s217] sm:$0xff] %v1348
        %1351 = vst [vmem:[%s217 + $0x8] sm:$0xff] %v1349
        %s1352 = sand.u32 %s137, 1
        %s1353 = scalar_lea.sflag [#allocation3], %s1352
        %s1354 = sand.u32 %s137, 1
        %s1355 = smul.addr %s1354, 16
        %s1356 = scalar_lea.vmem [#allocation2], %s1355
        // Predicated region
        $region41: #{tpu_custom_call.1} parent=39 // pred_check
          %p1357 = pneg %p147
        $region42: #{tpu_custom_call.1} parent=39 // pred_check_branch
          %1359 = sbr.rel (%p1357) target = $region44
        $region43: #{tpu_custom_call.1} parent=39 // pred_region
          %s1361 = ssub.s32 256, 256
          %1362 = vsyncadd %s1353, %s1361
          %s1363 = smul.addr %s19, 2
          %s1364 = smul.addr %s1363, 128
          %s1365 = scalar_lea.hbm %s5, %s1364
          %s1367 = sshll.u32 %s1356, 4
          %s1368 = int_to_ptr.vmem [resolvable:$true] %s1367
          %1370 = dma.vmem_to_hbm [thread:$0]  %s1368, 256, %s1365, %s1353
        $region44: #{tpu_custom_call.1} parent=39 // pred_fallthru
          _
      $region40: #{tpu_custom_call.1} parent=5 // pred_fallthru
        _
      %p1371 = scmp.le.s32.totalorder 2, %s14
      // Predicated region
      $region45: #{tpu_custom_call.1} parent=5 // pred_check
        %p1372 = pneg %p1371
      $region46: #{tpu_custom_call.1} parent=5 // pred_check_branch
        %1374 = sbr.rel (%p1372) target = $region48
      $region47: #{tpu_custom_call.1} parent=5 // pred_region
        %s1375 = ssub.s32 %s14, 2
        // Predicated region
        $region49: #{tpu_custom_call.1} parent=47 // pred_check
          %p1376 = pneg %p153
        $region50: #{tpu_custom_call.1} parent=47 // pred_check_branch
          %1378 = sbr.rel (%p1376) target = $region52
        $region51: #{tpu_custom_call.1} parent=47 // pred_region
          %s1379 = sand.u32 %s138, 1
          %s1380 = scalar_lea.sflag [#allocation3], %s1379
          %s1381 = sand.u32 %s138, 1
          %s1382 = smul.addr %s1381, 16
          %s1383 = scalar_lea.vmem [#allocation2], %s1382
          %1384 = dma.done %s1380, 256
        $region52: #{tpu_custom_call.1} parent=47 // pred_fallthru
          _
      $region48: #{tpu_custom_call.1} parent=5 // pred_fallthru
        _
    $region6: #{tpu_custom_call.1} parent=1 // loop_footer
      %s18 = sadd.s32 1, %s14
    $region7: #{tpu_custom_call.1} parent=1 // loop_footer_branch
      %13 = sbr.rel target = $region3
    $region8: #{tpu_custom_call.1} parent=1 // loop_exit
      _
    %1385 = vsyncpa [#allocation3], 1
    %s1386 = scalar_lea.sflag [#allocation3], 1
    %1387 = vsyncpa %s1386, 1

</llo_original>
